<compile_context>
chip_gen: v7x
topology: tpu7x:2x2x1
jax: 0.10.0
libtpu: 0.0.40
codegen_flags: <defaults>
</compile_context>

<pallas_src>
import functools

import numpy as np
import jax
import jax.numpy as jnp
from jax import lax
from jax.experimental import pallas as pl
from jax.experimental.pallas import tpu as pltpu


# ----------------------------------------------------------------------------
# Matcher configuration (deterministic, defined in-script)
# ----------------------------------------------------------------------------
NUM_QUERIES = 16
NUM_CLASSES = 8
SPECIALIZATION_GROUPS = [[0, 1], [2, 3], [4, 5], [6, 7]]
WEIGHT_DICT = {"cost_class": 2.0, "cost_bbox": 5.0, "cost_giou": 2.0}
USE_FOCAL_LOSS = False  # reference default path: softmax class cost

LANE = 128              # TPU lane width: pad target axis to a multiple of this
FORBIDDEN_COST = 1e8    # finite stand-in for np.inf on forbidden pairs
MAX_IMAGES_PER_STEP = 8


def build_group_tables(num_queries, num_classes, specialization_groups):
    """Mirrors the buffer construction in HungarianMatcher.__init__."""
    coco_class_to_group_id = np.full((num_classes,), -1, dtype=np.int32)
    for gidx, class_ids in enumerate(specialization_groups):
        for cid in class_ids:
            assert 0 <= cid < num_classes
            assert coco_class_to_group_id[cid] == -1
            coco_class_to_group_id[cid] = gidx

    num_groups = len(specialization_groups)
    query_to_group_id = np.zeros((num_queries,), dtype=np.int32)
    group_starts = []
    base = num_queries // num_groups
    rem = num_queries % num_groups
    start = 0
    for gidx in range(num_groups):
        n = base + (1 if gidx < rem else 0)
        group_starts.append(start)
        query_to_group_id[start:start + n] = gidx
        start += n
    return coco_class_to_group_id, query_to_group_id, group_starts


def pick_images_per_step(bs, max_g=MAX_IMAGES_PER_STEP):
    """Largest divisor G of bs with bs//G >= 2 (keeps >=2 grid steps)."""
    g = 1
    for cand in range(2, min(bs, max_g) + 1):
        if bs % cand == 0 and bs // cand >= 2:
            g = cand
    return g


# ----------------------------------------------------------------------------
# Pallas kernel: per-step masked cost tile  C[g, q, t]  for G images at once
# ----------------------------------------------------------------------------
def matcher_cost_kernel(logits_ref, pboxes_ref, tdata_ref, out_ref, *,
                        cost_class_w, cost_bbox_w, cost_giou_w,
                        num_classes, group_starts):
    logits = logits_ref[...]                              # [G, Q, C] f32
    g_blk, q, _ = logits.shape
    t = tdata_ref.shape[-1]

    # ---- softmax over classes (reference: non-focal path), exact denom ----
    m = jnp.max(logits, axis=-1, keepdims=True)
    e = jnp.exp(logits - m)
    prob = e / jnp.sum(e, axis=-1, keepdims=True)         # [G, Q, C]
    # Fold the class weight on the tiny [G, Q, C] tile (saves a [Q, Tp] mul).
    prob_w = prob * jnp.float32(cost_class_w)

    # ---- packed per-image target data: boxes / labels / group ids ----
    tdata = tdata_ref[...]                                # [G, 8, Tp] f32
    t_cx = tdata[:, 0:1, :]
    t_cy = tdata[:, 1:2, :]
    t_w = tdata[:, 2:3, :]
    t_h = tdata[:, 3:4, :]
    tlab = tdata[:, 4:5, :]                               # labels as f32 (-1 = pad)
    tgrp = tdata[:, 5:6, :].astype(jnp.int32)             # group ids (-1 = pad)

    pb = pboxes_ref[...]                                  # [G, Q, 4] cxcywh
    p_cx = pb[:, :, 0:1]
    p_cy = pb[:, :, 1:2]
    p_w = pb[:, :, 2:3]
    p_h = pb[:, :, 3:4]

    # ---- weighted L1 cdist (cxcywh space) accumulated straight into cmat ----
    cmat = jnp.abs(p_cx - t_cx)
    cmat = cmat + jnp.abs(p_cy - t_cy)
    cmat = cmat + jnp.abs(p_w - t_w)
    cmat = cmat + jnp.abs(p_h - t_h)
    cmat = cmat * jnp.float32(cost_bbox_w)                # [G, Q, Tp]

    # ---- class cost: -prob[:, tgt_ids] ----
    if num_classes <= 16:
        # Small C: select-accumulation on the VPU (2 ops/class) instead of
        # cmp->cast->mul->sub; exactly one label matches per target column.
        cost_class = jnp.zeros_like(cmat)
        for c in range(num_classes):
            cost_class = jnp.where(tlab == jnp.float32(c),
                                   -prob_w[:, :, c:c + 1], cost_class)
        cmat = cmat + cost_class
    else:
        # Large C: one-hot matmul (f32 accumulate, no bf16 quantization).
        cls_iota = lax.broadcasted_iota(jnp.int32, (g_blk, num_classes, t), 1)
        onehot = (cls_iota == tlab.astype(jnp.int32)).astype(jnp.float32)
        cmat = cmat - jnp.einsum('gqc,gct->gqt', prob_w, onehot,
                                 preferred_element_type=jnp.float32)

    # ---- boxes: cxcywh -> xyxy, IoU, GIoU ----
    p_x1 = p_cx - 0.5 * p_w
    p_y1 = p_cy - 0.5 * p_h
    p_x2 = p_cx + 0.5 * p_w
    p_y2 = p_cy + 0.5 * p_h
    t_x1 = t_cx - 0.5 * t_w
    t_y1 = t_cy - 0.5 * t_h
    t_x2 = t_cx + 0.5 * t_w
    t_y2 = t_cy + 0.5 * t_h

    area_p = (p_x2 - p_x1) * (p_y2 - p_y1)                # [G, Q, 1]
    area_t = (t_x2 - t_x1) * (t_y2 - t_y1)                # [G, 1, Tp]

    iw = jnp.maximum(jnp.minimum(p_x2, t_x2) - jnp.maximum(p_x1, t_x1), 0.0)
    ih = jnp.maximum(jnp.minimum(p_y2, t_y2) - jnp.maximum(p_y1, t_y1), 0.0)
    inter = iw * ih
    union = area_p + area_t - inter

    ew = jnp.maximum(jnp.maximum(p_x2, t_x2) - jnp.minimum(p_x1, t_x1), 0.0)
    eh = jnp.maximum(jnp.maximum(p_y2, t_y2) - jnp.minimum(p_y1, t_y1), 0.0)
    earea = ew * eh

    # Exact divides: the Hungarian solve downstream is tie-sensitive.
    # GIoU weight folded into a single fused update.
    giou = inter / union - (earea - union) / earea
    cmat = cmat - jnp.float32(cost_giou_w) * giou
    # nan_to_num dropped: softmax outputs and well-formed boxes are finite and
    # denominators are strictly positive for positive w/h.

    # ---- query-specialization mask (query->group table baked in as iota) ----
    q_iota = lax.broadcasted_iota(jnp.int32, (g_blk, q, 1), 1)
    qgrp = jnp.zeros((g_blk, q, 1), jnp.int32)
    for start in group_starts[1:]:
        qgrp = qgrp + (q_iota >= start).astype(jnp.int32)
    # Forbidden (query, target) pairs and padded target columns (group == -1)
    # get a large finite cost.
    mask = qgrp != tgrp                                   # [G, Q, Tp]
    out_ref[...] = jnp.where(mask, jnp.float32(FORBIDDEN_COST), cmat)


def compute_block_costs(pred_logits, pred_boxes, tdata_pad, *,
                        cost_class_w, cost_bbox_w, cost_giou_w,
                        group_starts, images_per_step):
    """Pallas call: per-image block-diagonal cost tiles -> [bs, Q, T_pad]."""
    bs, q, num_cls = pred_logits.shape
    t_pad = tdata_pad.shape[-1]
    g = images_per_step
    assert bs % g == 0

    kernel = functools.partial(
        matcher_cost_kernel,
        cost_class_w=float(cost_class_w),
        cost_bbox_w=float(cost_bbox_w),
        cost_giou_w=float(cost_giou_w),
        num_classes=int(num_cls),
        group_starts=tuple(int(s) for s in group_starts))

    grid_spec = pltpu.PrefetchScalarGridSpec(
        num_scalar_prefetch=0,
        grid=(bs // g,),
        in_specs=[
            pl.BlockSpec((g, q, num_cls), lambda b: (b, 0, 0)),  # logits
            pl.BlockSpec((g, q, 4), lambda b: (b, 0, 0)),        # pred boxes
            pl.BlockSpec((g, 8, t_pad), lambda b: (b, 0, 0)),    # packed tgt
        ],
        out_specs=pl.BlockSpec((g, q, t_pad), lambda b: (b, 0, 0)),
    )

    return pl.pallas_call(
        kernel,
        out_shape=jax.ShapeDtypeStruct((bs, q, t_pad), jnp.float32),
        grid_spec=grid_spec,
        compiler_params=pltpu.CompilerParams(
            dimension_semantics=("parallel",)),
    )(pred_logits.astype(jnp.float32), pred_boxes.astype(jnp.float32),
      tdata_pad)


# ----------------------------------------------------------------------------
# Host-side Hungarian assignment (sequential, data-dependent combinatorial
# algorithm -> stays on host).
# ----------------------------------------------------------------------------
# TODO(synk): linear_sum_assignment has no Pallas equivalent; it runs on host.
def linear_sum_assignment_np(cost):
    """Hungarian algorithm (shortest-augmenting-path / potentials version).

    Expects cost of shape (num_queries, num_targets) with num_queries >=
    num_targets; returns (row_ind, col_ind) like scipy (row_ind sorted).
    """
    cost = np.asarray(cost, dtype=np.float64)
    nr, nc = cost.shape
    assert nr >= nc, "expected at least as many queries as targets"
    a = cost.T                                   # (n, m) with n <= m
    n, m = a.shape
    INF = float("inf")
    u = np.zeros(n + 1)
    v = np.zeros(m + 1)
    p = np.zeros(m + 1, dtype=np.int64)          # p[j]: row of `a` matched to col j
    way = np.zeros(m + 1, dtype=np.int64)
    for i in range(1, n + 1):
        p[0] = i
        j0 = 0
        minv = np.full(m + 1, INF)
        used = np.zeros(m + 1, dtype=bool)
        while True:
            used[j0] = True
            i0 = p[j0]
            delta = INF
            j1 = 0
            for j in range(1, m + 1):
                if not used[j]:
                    cur = a[i0 - 1, j - 1] - u[i0] - v[j]
                    if cur < minv[j]:
                        minv[j] = cur
                        way[j] = j0
                    if minv[j] < delta:
                        delta = minv[j]
                        j1 = j
            for j in range(m + 1):
                if used[j]:
                    u[p[j]] += delta
                    v[j] -= delta
                else:
                    minv[j] -= delta
            j0 = j1
            if p[j0] == 0:
                break
        while j0 != 0:
            j1 = way[j0]
            p[j0] = p[j1]
            j0 = j1
    rows, cols = [], []
    for j in range(1, m + 1):
        if p[j] != 0:
            rows.append(j - 1)        # query index (row of original cost)
            cols.append(p[j] - 1)     # target index
    return np.asarray(rows, dtype=np.int64), np.asarray(cols, dtype=np.int64)


# ----------------------------------------------------------------------------
# Full forward: Pallas per-image cost tiles + host Hungarian matching
# ----------------------------------------------------------------------------
def hungarian_matcher_forward(outputs, targets,
                              weight_dict=WEIGHT_DICT,
                              num_queries=NUM_QUERIES,
                              num_classes=NUM_CLASSES,
                              specialization_groups=SPECIALIZATION_GROUPS):
    pred_logits = outputs["pred_logits"]   # [bs, Q, C]
    pred_boxes = outputs["pred_boxes"]     # [bs, Q, 4] (cxcywh)
    bs, q, _ = pred_logits.shape
    assert q == num_queries

    coco_class_to_group_id, _, group_starts = build_group_tables(
        num_queries, num_classes, specialization_groups)

    sizes = [len(t["boxes"]) for t in targets]
    t_max = max(max(sizes), 1)
    # Pad the per-image target axis to a multiple of 128 lanes -> lane-dense,
    # unmasked stores from the kernel. Padding is masked and never transferred.
    t_pad = ((t_max + LANE - 1) // LANE) * LANE

    # Packed target data: rows 0-3 boxes^T (cxcywh), row 4 labels, row 5 group
    # ids, rows 6-7 zero pad -> one exactly-full (8,128) VMEM tile per image.
    tdata_pad = np.zeros((bs, 8, t_pad), dtype=np.float32)
    tdata_pad[:, 4:6, :] = -1.0            # padded columns -> never match
    for b, tgt in enumerate(targets):
        nt = sizes[b]
        if nt:
            labels = np.asarray(tgt["labels"], dtype=np.int64)
            boxes = np.asarray(tgt["boxes"], dtype=np.float32)
            tdata_pad[b, 0:4, :nt] = boxes.T
            tdata_pad[b, 4, :nt] = labels.astype(np.float32)
            tdata_pad[b, 5, :nt] = coco_class_to_group_id[labels].astype(
                np.float32)

    g = pick_images_per_step(bs)
    c_blocks = compute_block_costs(
        jnp.asarray(pred_logits), jnp.asarray(pred_boxes),
        jnp.asarray(tdata_pad),
        cost_class_w=weight_dict["cost_class"],
        cost_bbox_w=weight_dict["cost_bbox"],
        cost_giou_w=weight_dict["cost_giou"],
        group_starts=group_starts,
        images_per_step=g)

    # D2H: only the valid target columns, not the 128-lane padded block.
    c_np = np.asarray(jax.block_until_ready(c_blocks[:, :, :t_max]))

    # TODO(synk): FORBIDDEN_COST is finite; an infeasible specialization group
    # silently matches forbidden pairs rather than erroring like scipy + inf.
    indices = []
    for b in range(bs):
        nt = sizes[b]
        if nt == 0:
            indices.append((np.zeros(0, np.int64), np.zeros(0, np.int64)))
            continue
        row_ind, col_ind = linear_sum_assignment_np(c_np[b, :, :nt])
        indices.append((row_ind, col_ind))
    return {"indices": indices}


# ----------------------------------------------------------------------------
# Pure-numpy reference cost (for correctness checking in the demo)
# ----------------------------------------------------------------------------
def reference_cost_np(logits, pboxes, labels, tboxes, wd, c2g, q2g):
    logits = np.asarray(logits, np.float64)
    pboxes = np.asarray(pboxes, np.float64)
    tboxes = np.asarray(tboxes, np.float64)
    prob = np.exp(logits - logits.max(-1, keepdims=True))
    prob = prob / prob.sum(-1, keepdims=True)
    cost_class = -prob[:, labels]
    cost_bbox = np.abs(pboxes[:, None, :] - tboxes[None, :, :]).sum(-1)

    def xyxy(b):
        cx, cy, w, h = b[..., 0], b[..., 1], b[..., 2], b[..., 3]
        return np.stack([cx - 0.5 * w, cy - 0.5 * h,
                         cx + 0.5 * w, cy + 0.5 * h], -1)

    pb, tb = xyxy(pboxes), xyxy(tboxes)
    area_p = (pb[:, 2] - pb[:, 0]) * (pb[:, 3] - pb[:, 1])
    area_t = (tb[:, 2] - tb[:, 0]) * (tb[:, 3] - tb[:, 1])
    lt = np.maximum(pb[:, None, :2], tb[None, :, :2])
    rb = np.minimum(pb[:, None, 2:], tb[None, :, 2:])
    wh = np.clip(rb - lt, 0.0, None)
    inter = wh[..., 0] * wh[..., 1]
    union = area_p[:, None] + area_t[None, :] - inter
    iou = inter / union
    elt = np.minimum(pb[:, None, :2], tb[None, :, :2])
    erb = np.maximum(pb[:, None, 2:], tb[None, :, 2:])
    ewh = np.clip(erb - elt, 0.0, None)
    earea = ewh[..., 0] * ewh[..., 1]
    giou = iou - (earea - union) / earea
    cmat = (wd["cost_bbox"] * cost_bbox + wd["cost_class"] * cost_class
            + wd["cost_giou"] * (-giou))
    mask = q2g[:, None] != c2g[labels][None, :]
    return np.where(mask, FORBIDDEN_COST, cmat)


# ----------------------------------------------------------------------------
# Demo
# ----------------------------------------------------------------------------
if __name__ == "__main__":
    key = jax.random.PRNGKey(0)
    bs = 4  # divisible batch -> G=2 images per grid step, 2 grid steps

    k_logits, k_cxy, k_wh, k_t0, k_t1, k_t2, k_t3 = jax.random.split(key, 7)
    pred_logits = jax.random.normal(k_logits, (bs, NUM_QUERIES, NUM_CLASSES),
                                    dtype=jnp.float32)
    # cxcywh boxes strictly inside the unit square with positive w/h
    cxy = jax.random.uniform(k_cxy, (bs, NUM_QUERIES, 2),
                             minval=0.3, maxval=0.7)
    wh = jax.random.uniform(k_wh, (bs, NUM_QUERIES, 2),
                            minval=0.1, maxval=0.4)
    pred_boxes = jnp.concatenate([cxy, wh], axis=-1)

    # Deterministic targets (labels chosen so every specialization group has
    # enough queries for a feasible assignment: 4 queries per group here).
    target_labels = [
        np.array([0, 2, 5], dtype=np.int64),            # groups 0, 1, 2
        np.array([1, 3, 4, 6, 7], dtype=np.int64),      # groups 0, 1, 2, 3, 3
        np.array([0, 1, 2, 3], dtype=np.int64),         # groups 0, 0, 1, 1
        np.array([7], dtype=np.int64),                  # group 3
    ]
    tgt_keys = [k_t0, k_t1, k_t2, k_t3]

    def rand_boxes(k, n):
        kc, kw = jax.random.split(k)
        c = jax.random.uniform(kc, (n, 2), minval=0.3, maxval=0.7)
        w = jax.random.uniform(kw, (n, 2), minval=0.1, maxval=0.4)
        return np.asarray(jnp.concatenate([c, w], axis=-1), dtype=np.float32)

    targets = [{"labels": labs, "boxes": rand_boxes(k, len(labs))}
               for labs, k in zip(target_labels, tgt_keys)]

    outputs = {"pred_logits": pred_logits, "pred_boxes": pred_boxes}
    result = hungarian_matcher_forward(outputs, targets)

    # ---- verification ----
    c2g, q2g, gstarts = build_group_tables(NUM_QUERIES, NUM_CLASSES,
                                           SPECIALIZATION_GROUPS)

    # 1) kernel cost tiles match a pure-numpy reference on the valid region
    sizes = [len(t["labels"]) for t in targets]
    t_max = max(sizes)
    t_pad = ((t_max + LANE - 1) // LANE) * LANE
    tdata_pad = np.zeros((bs, 8, t_pad), dtype=np.float32)
    tdata_pad[:, 4:6, :] = -1.0
    for b, tgt in enumerate(targets):
        nt = sizes[b]
        tdata_pad[b, 0:4, :nt] = np.asarray(tgt["boxes"]).T
        tdata_pad[b, 4, :nt] = tgt["labels"].astype(np.float32)
        tdata_pad[b, 5, :nt] = c2g[tgt["labels"]].astype(np.float32)
    c_blocks = compute_block_costs(
        jnp.asarray(pred_logits), jnp.asarray(pred_boxes),
        jnp.asarray(tdata_pad),
        cost_class_w=WEIGHT_DICT["cost_class"],
        cost_bbox_w=WEIGHT_DICT["cost_bbox"],
        cost_giou_w=WEIGHT_DICT["cost_giou"],
        group_starts=gstarts,
        images_per_step=pick_images_per_step(bs))
    c_full = np.asarray(jax.block_until_ready(c_blocks))
    pl_np = np.asarray(pred_logits)
    pb_np = np.asarray(pred_boxes)
    for b in range(bs):
        nt = sizes[b]
        ref = reference_cost_np(pl_np[b], pb_np[b], targets[b]["labels"],
                                targets[b]["boxes"], WEIGHT_DICT, c2g, q2g)
        np.testing.assert_allclose(c_full[b, :, :nt], ref,
                                   rtol=1e-4, atol=1e-4)

    # 2) one match per target, matched queries belong to the right group
    for b, (ri, ci) in enumerate(result["indices"]):
        assert len(ri) == len(ci) == len(targets[b]["labels"])
        tgt_groups_b = c2g[targets[b]["labels"]]
        assert np.all(q2g[ri] == tgt_groups_b[ci])

    print("KERNEL_OK")
</pallas_src>

<mosaic_0001>
module attributes {stable_mosaic.version = 11 : i64} {
  func.func @matcher_cost_kernel(%arg0: i32, %arg1: memref<2x16x8xf32, #tpu.memory_space<vmem>>, %arg2: memref<2x16x4xf32, #tpu.memory_space<vmem>>, %arg3: memref<2x8x128xf32, #tpu.memory_space<vmem>>, %arg4: memref<2x16x128xf32, #tpu.memory_space<vmem>>) attributes {dimension_semantics = [#tpu.dimension_semantics<parallel>], iteration_bounds = array<i64: 2>, scalar_prefetch = 0 : i64, scratch_operands = 0 : i64, tpu.core_type = #tpu.core_type<tc>, window_params = [{transform_indices = @transform_0, window_bounds = array<i64: 2, 16, 8>}, {transform_indices = @transform_1, window_bounds = array<i64: 2, 16, 4>}, {transform_indices = @transform_2, window_bounds = array<i64: 2, 8, 128>}, {transform_indices = @transform_3, window_bounds = array<i64: 2, 16, 128>}]} {
    %c0 = arith.constant 0 : index
    %c0_0 = arith.constant 0 : index
    %c0_1 = arith.constant 0 : index
    %0 = vector.load %arg1[%c0, %c0_0, %c0_1] : memref<2x16x8xf32, #tpu.memory_space<vmem>>, vector<2x16x8xf32>
    %cst = arith.constant dense<0xFF800000> : vector<2x16xf32>
    %1 = vector.multi_reduction <maximumf>, %0, %cst [2] : vector<2x16x8xf32> to vector<2x16xf32>
    %2 = vector.shape_cast %1 : vector<2x16xf32> to vector<2x16x1xf32>
    %3 = vector.broadcast %2 : vector<2x16x1xf32> to vector<2x16x8xf32>
    %4 = arith.subf %0, %3 : vector<2x16x8xf32>
    %5 = math.exp %4 : vector<2x16x8xf32>
    %cst_2 = arith.constant dense<0.000000e+00> : vector<2x16xf32>
    %6 = vector.multi_reduction <add>, %5, %cst_2 [2] : vector<2x16x8xf32> to vector<2x16xf32>
    %7 = vector.shape_cast %6 : vector<2x16xf32> to vector<2x16x1xf32>
    %8 = vector.broadcast %7 : vector<2x16x1xf32> to vector<2x16x8xf32>
    %9 = arith.divf %5, %8 : vector<2x16x8xf32>
    %cst_3 = arith.constant 2.000000e+00 : f32
    %10 = vector.broadcast %cst_3 : f32 to vector<2x16x8xf32>
    %11 = arith.mulf %9, %10 : vector<2x16x8xf32>
    %c0_4 = arith.constant 0 : index
    %c0_5 = arith.constant 0 : index
    %c0_6 = arith.constant 0 : index
    %12 = vector.load %arg3[%c0_4, %c0_5, %c0_6] : memref<2x8x128xf32, #tpu.memory_space<vmem>>, vector<2x8x128xf32>
    %13 = vector.extract_strided_slice %12 {offsets = [0, 0, 0], sizes = [2, 1, 128], strides = [1, 1, 1]} : vector<2x8x128xf32> to vector<2x1x128xf32>
    %14 = vector.extract_strided_slice %12 {offsets = [0, 1, 0], sizes = [2, 1, 128], strides = [1, 1, 1]} : vector<2x8x128xf32> to vector<2x1x128xf32>
    %15 = vector.extract_strided_slice %12 {offsets = [0, 2, 0], sizes = [2, 1, 128], strides = [1, 1, 1]} : vector<2x8x128xf32> to vector<2x1x128xf32>
    %16 = vector.extract_strided_slice %12 {offsets = [0, 3, 0], sizes = [2, 1, 128], strides = [1, 1, 1]} : vector<2x8x128xf32> to vector<2x1x128xf32>
    %17 = vector.extract_strided_slice %12 {offsets = [0, 4, 0], sizes = [2, 1, 128], strides = [1, 1, 1]} : vector<2x8x128xf32> to vector<2x1x128xf32>
    %18 = vector.extract_strided_slice %12 {offsets = [0, 5, 0], sizes = [2, 1, 128], strides = [1, 1, 1]} : vector<2x8x128xf32> to vector<2x1x128xf32>
    %19 = arith.fptosi %18 : vector<2x1x128xf32> to vector<2x1x128xi32>
    %c0_7 = arith.constant 0 : index
    %c0_8 = arith.constant 0 : index
    %c0_9 = arith.constant 0 : index
    %20 = vector.load %arg2[%c0_7, %c0_8, %c0_9] : memref<2x16x4xf32, #tpu.memory_space<vmem>>, vector<2x16x4xf32>
    %21 = vector.extract_strided_slice %20 {offsets = [0, 0, 0], sizes = [2, 16, 1], strides = [1, 1, 1]} : vector<2x16x4xf32> to vector<2x16x1xf32>
    %22 = vector.extract_strided_slice %20 {offsets = [0, 0, 1], sizes = [2, 16, 1], strides = [1, 1, 1]} : vector<2x16x4xf32> to vector<2x16x1xf32>
    %23 = vector.extract_strided_slice %20 {offsets = [0, 0, 2], sizes = [2, 16, 1], strides = [1, 1, 1]} : vector<2x16x4xf32> to vector<2x16x1xf32>
    %24 = vector.extract_strided_slice %20 {offsets = [0, 0, 3], sizes = [2, 16, 1], strides = [1, 1, 1]} : vector<2x16x4xf32> to vector<2x16x1xf32>
    %25 = vector.broadcast %21 : vector<2x16x1xf32> to vector<2x16x128xf32>
    %26 = vector.broadcast %13 : vector<2x1x128xf32> to vector<2x16x128xf32>
    %27 = arith.subf %25, %26 : vector<2x16x128xf32>
    %28 = math.absf %27 : vector<2x16x128xf32>
    %29 = vector.broadcast %22 : vector<2x16x1xf32> to vector<2x16x128xf32>
    %30 = vector.broadcast %14 : vector<2x1x128xf32> to vector<2x16x128xf32>
    %31 = arith.subf %29, %30 : vector<2x16x128xf32>
    %32 = math.absf %31 : vector<2x16x128xf32>
    %33 = arith.addf %28, %32 : vector<2x16x128xf32>
    %34 = vector.broadcast %23 : vector<2x16x1xf32> to vector<2x16x128xf32>
    %35 = vector.broadcast %15 : vector<2x1x128xf32> to vector<2x16x128xf32>
    %36 = arith.subf %34, %35 : vector<2x16x128xf32>
    %37 = math.absf %36 : vector<2x16x128xf32>
    %38 = arith.addf %33, %37 : vector<2x16x128xf32>
    %39 = vector.broadcast %24 : vector<2x16x1xf32> to vector<2x16x128xf32>
    %40 = vector.broadcast %16 : vector<2x1x128xf32> to vector<2x16x128xf32>
    %41 = arith.subf %39, %40 : vector<2x16x128xf32>
    %42 = math.absf %41 : vector<2x16x128xf32>
    %43 = arith.addf %38, %42 : vector<2x16x128xf32>
    %cst_10 = arith.constant 5.000000e+00 : f32
    %44 = vector.broadcast %cst_10 : f32 to vector<2x16x128xf32>
    %45 = arith.mulf %43, %44 : vector<2x16x128xf32>
    %cst_11 = arith.constant 0.000000e+00 : f32
    %46 = vector.broadcast %cst_11 : f32 to vector<2x16x128xf32>
    %cst_12 = arith.constant 0.000000e+00 : f32
    %47 = vector.broadcast %cst_12 : f32 to vector<2x1x128xf32>
    %48 = arith.cmpf oeq, %17, %47 : vector<2x1x128xf32>
    %49 = vector.extract_strided_slice %11 {offsets = [0, 0, 0], sizes = [2, 16, 1], strides = [1, 1, 1]} : vector<2x16x8xf32> to vector<2x16x1xf32>
    %cst_13 = arith.constant 0.000000e+00 : f32
    %50 = vector.broadcast %cst_13 : f32 to vector<2x16x1xf32>
    %51 = arith.subf %50, %49 : vector<2x16x1xf32>
    %52 = vector.shape_cast %48 : vector<2x1x128xi1> to vector<2x1x128xi1>
    %53 = vector.broadcast %52 : vector<2x1x128xi1> to vector<2x16x128xi1>
    %54 = vector.shape_cast %51 : vector<2x16x1xf32> to vector<2x16x1xf32>
    %55 = vector.broadcast %54 : vector<2x16x1xf32> to vector<2x16x128xf32>
    %56 = arith.select %53, %55, %46 : vector<2x16x128xi1>, vector<2x16x128xf32>
    %cst_14 = arith.constant 1.000000e+00 : f32
    %57 = vector.broadcast %cst_14 : f32 to vector<2x1x128xf32>
    %58 = arith.cmpf oeq, %17, %57 : vector<2x1x128xf32>
    %59 = vector.extract_strided_slice %11 {offsets = [0, 0, 1], sizes = [2, 16, 1], strides = [1, 1, 1]} : vector<2x16x8xf32> to vector<2x16x1xf32>
    %cst_15 = arith.constant 0.000000e+00 : f32
    %60 = vector.broadcast %cst_15 : f32 to vector<2x16x1xf32>
    %61 = arith.subf %60, %59 : vector<2x16x1xf32>
    %62 = vector.shape_cast %58 : vector<2x1x128xi1> to vector<2x1x128xi1>
    %63 = vector.broadcast %62 : vector<2x1x128xi1> to vector<2x16x128xi1>
    %64 = vector.shape_cast %61 : vector<2x16x1xf32> to vector<2x16x1xf32>
    %65 = vector.broadcast %64 : vector<2x16x1xf32> to vector<2x16x128xf32>
    %66 = arith.select %63, %65, %56 : vector<2x16x128xi1>, vector<2x16x128xf32>
    %cst_16 = arith.constant 2.000000e+00 : f32
    %67 = vector.broadcast %cst_16 : f32 to vector<2x1x128xf32>
    %68 = arith.cmpf oeq, %17, %67 : vector<2x1x128xf32>
    %69 = vector.extract_strided_slice %11 {offsets = [0, 0, 2], sizes = [2, 16, 1], strides = [1, 1, 1]} : vector<2x16x8xf32> to vector<2x16x1xf32>
    %cst_17 = arith.constant 0.000000e+00 : f32
    %70 = vector.broadcast %cst_17 : f32 to vector<2x16x1xf32>
    %71 = arith.subf %70, %69 : vector<2x16x1xf32>
    %72 = vector.shape_cast %68 : vector<2x1x128xi1> to vector<2x1x128xi1>
    %73 = vector.broadcast %72 : vector<2x1x128xi1> to vector<2x16x128xi1>
    %74 = vector.shape_cast %71 : vector<2x16x1xf32> to vector<2x16x1xf32>
    %75 = vector.broadcast %74 : vector<2x16x1xf32> to vector<2x16x128xf32>
    %76 = arith.select %73, %75, %66 : vector<2x16x128xi1>, vector<2x16x128xf32>
    %cst_18 = arith.constant 3.000000e+00 : f32
    %77 = vector.broadcast %cst_18 : f32 to vector<2x1x128xf32>
    %78 = arith.cmpf oeq, %17, %77 : vector<2x1x128xf32>
    %79 = vector.extract_strided_slice %11 {offsets = [0, 0, 3], sizes = [2, 16, 1], strides = [1, 1, 1]} : vector<2x16x8xf32> to vector<2x16x1xf32>
    %cst_19 = arith.constant 0.000000e+00 : f32
    %80 = vector.broadcast %cst_19 : f32 to vector<2x16x1xf32>
    %81 = arith.subf %80, %79 : vector<2x16x1xf32>
    %82 = vector.shape_cast %78 : vector<2x1x128xi1> to vector<2x1x128xi1>
    %83 = vector.broadcast %82 : vector<2x1x128xi1> to vector<2x16x128xi1>
    %84 = vector.shape_cast %81 : vector<2x16x1xf32> to vector<2x16x1xf32>
    %85 = vector.broadcast %84 : vector<2x16x1xf32> to vector<2x16x128xf32>
    %86 = arith.select %83, %85, %76 : vector<2x16x128xi1>, vector<2x16x128xf32>
    %cst_20 = arith.constant 4.000000e+00 : f32
    %87 = vector.broadcast %cst_20 : f32 to vector<2x1x128xf32>
    %88 = arith.cmpf oeq, %17, %87 : vector<2x1x128xf32>
    %89 = vector.extract_strided_slice %11 {offsets = [0, 0, 4], sizes = [2, 16, 1], strides = [1, 1, 1]} : vector<2x16x8xf32> to vector<2x16x1xf32>
    %cst_21 = arith.constant 0.000000e+00 : f32
    %90 = vector.broadcast %cst_21 : f32 to vector<2x16x1xf32>
    %91 = arith.subf %90, %89 : vector<2x16x1xf32>
    %92 = vector.shape_cast %88 : vector<2x1x128xi1> to vector<2x1x128xi1>
    %93 = vector.broadcast %92 : vector<2x1x128xi1> to vector<2x16x128xi1>
    %94 = vector.shape_cast %91 : vector<2x16x1xf32> to vector<2x16x1xf32>
    %95 = vector.broadcast %94 : vector<2x16x1xf32> to vector<2x16x128xf32>
    %96 = arith.select %93, %95, %86 : vector<2x16x128xi1>, vector<2x16x128xf32>
    %cst_22 = arith.constant 5.000000e+00 : f32
    %97 = vector.broadcast %cst_22 : f32 to vector<2x1x128xf32>
    %98 = arith.cmpf oeq, %17, %97 : vector<2x1x128xf32>
    %99 = vector.extract_strided_slice %11 {offsets = [0, 0, 5], sizes = [2, 16, 1], strides = [1, 1, 1]} : vector<2x16x8xf32> to vector<2x16x1xf32>
    %cst_23 = arith.constant 0.000000e+00 : f32
    %100 = vector.broadcast %cst_23 : f32 to vector<2x16x1xf32>
    %101 = arith.subf %100, %99 : vector<2x16x1xf32>
    %102 = vector.shape_cast %98 : vector<2x1x128xi1> to vector<2x1x128xi1>
    %103 = vector.broadcast %102 : vector<2x1x128xi1> to vector<2x16x128xi1>
    %104 = vector.shape_cast %101 : vector<2x16x1xf32> to vector<2x16x1xf32>
    %105 = vector.broadcast %104 : vector<2x16x1xf32> to vector<2x16x128xf32>
    %106 = arith.select %103, %105, %96 : vector<2x16x128xi1>, vector<2x16x128xf32>
    %cst_24 = arith.constant 6.000000e+00 : f32
    %107 = vector.broadcast %cst_24 : f32 to vector<2x1x128xf32>
    %108 = arith.cmpf oeq, %17, %107 : vector<2x1x128xf32>
    %109 = vector.extract_strided_slice %11 {offsets = [0, 0, 6], sizes = [2, 16, 1], strides = [1, 1, 1]} : vector<2x16x8xf32> to vector<2x16x1xf32>
    %cst_25 = arith.constant 0.000000e+00 : f32
    %110 = vector.broadcast %cst_25 : f32 to vector<2x16x1xf32>
    %111 = arith.subf %110, %109 : vector<2x16x1xf32>
    %112 = vector.shape_cast %108 : vector<2x1x128xi1> to vector<2x1x128xi1>
    %113 = vector.broadcast %112 : vector<2x1x128xi1> to vector<2x16x128xi1>
    %114 = vector.shape_cast %111 : vector<2x16x1xf32> to vector<2x16x1xf32>
    %115 = vector.broadcast %114 : vector<2x16x1xf32> to vector<2x16x128xf32>
    %116 = arith.select %113, %115, %106 : vector<2x16x128xi1>, vector<2x16x128xf32>
    %cst_26 = arith.constant 7.000000e+00 : f32
    %117 = vector.broadcast %cst_26 : f32 to vector<2x1x128xf32>
    %118 = arith.cmpf oeq, %17, %117 : vector<2x1x128xf32>
    %119 = vector.extract_strided_slice %11 {offsets = [0, 0, 7], sizes = [2, 16, 1], strides = [1, 1, 1]} : vector<2x16x8xf32> to vector<2x16x1xf32>
    %cst_27 = arith.constant 0.000000e+00 : f32
    %120 = vector.broadcast %cst_27 : f32 to vector<2x16x1xf32>
    %121 = arith.subf %120, %119 : vector<2x16x1xf32>
    %122 = vector.shape_cast %118 : vector<2x1x128xi1> to vector<2x1x128xi1>
    %123 = vector.broadcast %122 : vector<2x1x128xi1> to vector<2x16x128xi1>
    %124 = vector.shape_cast %121 : vector<2x16x1xf32> to vector<2x16x1xf32>
    %125 = vector.broadcast %124 : vector<2x16x1xf32> to vector<2x16x128xf32>
    %126 = arith.select %123, %125, %116 : vector<2x16x128xi1>, vector<2x16x128xf32>
    %127 = arith.addf %45, %126 : vector<2x16x128xf32>
    %cst_28 = arith.constant 5.000000e-01 : f32
    %128 = vector.broadcast %cst_28 : f32 to vector<2x16x1xf32>
    %129 = arith.mulf %128, %23 : vector<2x16x1xf32>
    %130 = arith.subf %21, %129 : vector<2x16x1xf32>
    %cst_29 = arith.constant 5.000000e-01 : f32
    %131 = vector.broadcast %cst_29 : f32 to vector<2x16x1xf32>
    %132 = arith.mulf %131, %24 : vector<2x16x1xf32>
    %133 = arith.subf %22, %132 : vector<2x16x1xf32>
    %cst_30 = arith.constant 5.000000e-01 : f32
    %134 = vector.broadcast %cst_30 : f32 to vector<2x16x1xf32>
    %135 = arith.mulf %134, %23 : vector<2x16x1xf32>
    %136 = arith.addf %21, %135 : vector<2x16x1xf32>
    %cst_31 = arith.constant 5.000000e-01 : f32
    %137 = vector.broadcast %cst_31 : f32 to vector<2x16x1xf32>
    %138 = arith.mulf %137, %24 : vector<2x16x1xf32>
    %139 = arith.addf %22, %138 : vector<2x16x1xf32>
    %cst_32 = arith.constant 5.000000e-01 : f32
    %140 = vector.broadcast %cst_32 : f32 to vector<2x1x128xf32>
    %141 = arith.mulf %140, %15 : vector<2x1x128xf32>
    %142 = arith.subf %13, %141 : vector<2x1x128xf32>
    %cst_33 = arith.constant 5.000000e-01 : f32
    %143 = vector.broadcast %cst_33 : f32 to vector<2x1x128xf32>
    %144 = arith.mulf %143, %16 : vector<2x1x128xf32>
    %145 = arith.subf %14, %144 : vector<2x1x128xf32>
    %cst_34 = arith.constant 5.000000e-01 : f32
    %146 = vector.broadcast %cst_34 : f32 to vector<2x1x128xf32>
    %147 = arith.mulf %146, %15 : vector<2x1x128xf32>
    %148 = arith.addf %13, %147 : vector<2x1x128xf32>
    %cst_35 = arith.constant 5.000000e-01 : f32
    %149 = vector.broadcast %cst_35 : f32 to vector<2x1x128xf32>
    %150 = arith.mulf %149, %16 : vector<2x1x128xf32>
    %151 = arith.addf %14, %150 : vector<2x1x128xf32>
    %152 = arith.subf %136, %130 : vector<2x16x1xf32>
    %153 = arith.subf %139, %133 : vector<2x16x1xf32>
    %154 = arith.mulf %152, %153 : vector<2x16x1xf32>
    %155 = arith.subf %148, %142 : vector<2x1x128xf32>
    %156 = arith.subf %151, %145 : vector<2x1x128xf32>
    %157 = arith.mulf %155, %156 : vector<2x1x128xf32>
    %158 = vector.broadcast %136 : vector<2x16x1xf32> to vector<2x16x128xf32>
    %159 = vector.broadcast %148 : vector<2x1x128xf32> to vector<2x16x128xf32>
    %160 = arith.minimumf %158, %159 : vector<2x16x128xf32>
    %161 = vector.broadcast %130 : vector<2x16x1xf32> to vector<2x16x128xf32>
    %162 = vector.broadcast %142 : vector<2x1x128xf32> to vector<2x16x128xf32>
    %163 = arith.maximumf %161, %162 : vector<2x16x128xf32>
    %164 = arith.subf %160, %163 : vector<2x16x128xf32>
    %cst_36 = arith.constant 0.000000e+00 : f32
    %165 = vector.broadcast %cst_36 : f32 to vector<2x16x128xf32>
    %166 = arith.maximumf %164, %165 : vector<2x16x128xf32>
    %167 = vector.broadcast %139 : vector<2x16x1xf32> to vector<2x16x128xf32>
    %168 = vector.broadcast %151 : vector<2x1x128xf32> to vector<2x16x128xf32>
    %169 = arith.minimumf %167, %168 : vector<2x16x128xf32>
    %170 = vector.broadcast %133 : vector<2x16x1xf32> to vector<2x16x128xf32>
    %171 = vector.broadcast %145 : vector<2x1x128xf32> to vector<2x16x128xf32>
    %172 = arith.maximumf %170, %171 : vector<2x16x128xf32>
    %173 = arith.subf %169, %172 : vector<2x16x128xf32>
    %cst_37 = arith.constant 0.000000e+00 : f32
    %174 = vector.broadcast %cst_37 : f32 to vector<2x16x128xf32>
    %175 = arith.maximumf %173, %174 : vector<2x16x128xf32>
    %176 = arith.mulf %166, %175 : vector<2x16x128xf32>
    %177 = vector.broadcast %154 : vector<2x16x1xf32> to vector<2x16x128xf32>
    %178 = vector.broadcast %157 : vector<2x1x128xf32> to vector<2x16x128xf32>
    %179 = arith.addf %177, %178 : vector<2x16x128xf32>
    %180 = arith.subf %179, %176 : vector<2x16x128xf32>
    %181 = vector.broadcast %136 : vector<2x16x1xf32> to vector<2x16x128xf32>
    %182 = vector.broadcast %148 : vector<2x1x128xf32> to vector<2x16x128xf32>
    %183 = arith.maximumf %181, %182 : vector<2x16x128xf32>
    %184 = vector.broadcast %130 : vector<2x16x1xf32> to vector<2x16x128xf32>
    %185 = vector.broadcast %142 : vector<2x1x128xf32> to vector<2x16x128xf32>
    %186 = arith.minimumf %184, %185 : vector<2x16x128xf32>
    %187 = arith.subf %183, %186 : vector<2x16x128xf32>
    %cst_38 = arith.constant 0.000000e+00 : f32
    %188 = vector.broadcast %cst_38 : f32 to vector<2x16x128xf32>
    %189 = arith.maximumf %187, %188 : vector<2x16x128xf32>
    %190 = vector.broadcast %139 : vector<2x16x1xf32> to vector<2x16x128xf32>
    %191 = vector.broadcast %151 : vector<2x1x128xf32> to vector<2x16x128xf32>
    %192 = arith.maximumf %190, %191 : vector<2x16x128xf32>
    %193 = vector.broadcast %133 : vector<2x16x1xf32> to vector<2x16x128xf32>
    %194 = vector.broadcast %145 : vector<2x1x128xf32> to vector<2x16x128xf32>
    %195 = arith.minimumf %193, %194 : vector<2x16x128xf32>
    %196 = arith.subf %192, %195 : vector<2x16x128xf32>
    %cst_39 = arith.constant 0.000000e+00 : f32
    %197 = vector.broadcast %cst_39 : f32 to vector<2x16x128xf32>
    %198 = arith.maximumf %196, %197 : vector<2x16x128xf32>
    %199 = arith.mulf %189, %198 : vector<2x16x128xf32>
    %200 = arith.divf %176, %180 : vector<2x16x128xf32>
    %201 = arith.subf %199, %180 : vector<2x16x128xf32>
    %202 = arith.divf %201, %199 : vector<2x16x128xf32>
    %203 = arith.subf %200, %202 : vector<2x16x128xf32>
    %cst_40 = arith.constant 2.000000e+00 : f32
    %204 = vector.broadcast %cst_40 : f32 to vector<2x16x128xf32>
    %205 = arith.mulf %204, %203 : vector<2x16x128xf32>
    %206 = arith.subf %127, %205 : vector<2x16x128xf32>
    %207 = tpu.iota {dimensions = array<i32: 1>} : vector<2x16x1xi32>
    %c0_i32 = arith.constant 0 : i32
    %208 = vector.broadcast %c0_i32 : i32 to vector<2x16x1xi32>
    %c4_i32 = arith.constant 4 : i32
    %209 = vector.broadcast %c4_i32 : i32 to vector<2x16x1xi32>
    %210 = arith.cmpi sge, %207, %209 : vector<2x16x1xi32>
    %211 = arith.extui %210 : vector<2x16x1xi1> to vector<2x16x1xi32>
    %212 = arith.addi %208, %211 : vector<2x16x1xi32>
    %c8_i32 = arith.constant 8 : i32
    %213 = vector.broadcast %c8_i32 : i32 to vector<2x16x1xi32>
    %214 = arith.cmpi sge, %207, %213 : vector<2x16x1xi32>
    %215 = arith.extui %214 : vector<2x16x1xi1> to vector<2x16x1xi32>
    %216 = arith.addi %212, %215 : vector<2x16x1xi32>
    %c12_i32 = arith.constant 12 : i32
    %217 = vector.broadcast %c12_i32 : i32 to vector<2x16x1xi32>
    %218 = arith.cmpi sge, %207, %217 : vector<2x16x1xi32>
    %219 = arith.extui %218 : vector<2x16x1xi1> to vector<2x16x1xi32>
    %220 = arith.addi %216, %219 : vector<2x16x1xi32>
    %221 = vector.broadcast %220 : vector<2x16x1xi32> to vector<2x16x128xi32>
    %222 = vector.broadcast %19 : vector<2x1x128xi32> to vector<2x16x128xi32>
    %223 = arith.cmpi ne, %221, %222 : vector<2x16x128xi32>
    %cst_41 = arith.constant 1.000000e+08 : f32
    %224 = vector.broadcast %cst_41 : f32 to vector<2x16x128xf32>
    %225 = arith.select %223, %224, %206 : vector<2x16x128xi1>, vector<2x16x128xf32>
    %c0_42 = arith.constant 0 : index
    %c0_43 = arith.constant 0 : index
    %c0_44 = arith.constant 0 : index
    %226 = vector.load %arg4[%c0_42, %c0_43, %c0_44] : memref<2x16x128xf32, #tpu.memory_space<vmem>>, vector<2x16x128xf32>
    tpu.vector_store %arg4[%c0_42, %c0_43, %c0_44], %225 {strides = array<i32>} : memref<2x16x128xf32, #tpu.memory_space<vmem>>, vector<2x16x128xf32>,
    return
  }
  func.func @transform_0(%arg0: i32) -> (i32, i32, i32) {
    %c0_i32 = arith.constant 0 : i32
    %c0_i32_0 = arith.constant 0 : i32
    %c0_i32_1 = arith.constant 0 : i32
    return %arg0, %c0_i32, %c0_i32_0 : i32, i32, i32
  }
  func.func @transform_1(%arg0: i32) -> (i32, i32, i32) {
    %c0_i32 = arith.constant 0 : i32
    %c0_i32_0 = arith.constant 0 : i32
    %c0_i32_1 = arith.constant 0 : i32
    return %arg0, %c0_i32, %c0_i32_0 : i32, i32, i32
  }
  func.func @transform_2(%arg0: i32) -> (i32, i32, i32) {
    %c0_i32 = arith.constant 0 : i32
    %c0_i32_0 = arith.constant 0 : i32
    %c0_i32_1 = arith.constant 0 : i32
    return %arg0, %c0_i32, %c0_i32_0 : i32, i32, i32
  }
  func.func @transform_3(%arg0: i32) -> (i32, i32, i32) {
    %c0_i32 = arith.constant 0 : i32
    %c0_i32_0 = arith.constant 0 : i32
    %c0_i32_1 = arith.constant 0 : i32
    return %arg0, %c0_i32, %c0_i32_0 : i32, i32, i32
  }
}

</mosaic_0001>

<llo_original>
// kernel: tpu_custom_call.1
$region0: #{tpu_custom_call.1}
  #allocation0 [shape = 'u32[]', space=smem, size = 0x4, offset = 0x4, fixed_abs, tag = 'smem constant byte address 0x4 - core index']
  #allocation1 [shape = 'u32[144,128]{1,0:T(1,128)}', space=vmem, size = 0x12000, scoped, tag = 'internal scratch']
  %s0 = inlined_call_operand.vmem [shape: f32[4,16,8], index: 0, kind: input, shape index: {}]
  %s1 = inlined_call_operand.vmem [shape: f32[4,16,4], index: 1, kind: input, shape index: {}]
  %s2 = inlined_call_operand.vmem [shape: f32[4,8,128], index: 2, kind: input, shape index: {}]
  %s3 = inlined_call_operand.hbm [shape: f32[4,16,128], index: 3, kind: output, shape index: {}]
  %s4 = sld [smem:[#allocation0]]
  $region45: #{tpu_custom_call.1} parent=0
    _
  %s6 = ssub.s32 1, %s4
  %s7 = scalar_select 0, %s6, %s4
  $region1: #{tpu_custom_call.1} parent=0
    #allocation2 [shape = 'u8[32768]{0}', space=vmem, size = 0x8000, scoped, tag = 'output window, operand 0']
    #allocation3 [shape = 's32[2]{0}', space=sflag, size = 0x8, scoped, tag = 'scoped memory for tpu_custom_call.1']
    %8 = vsyncpa [#allocation3], 0
    %s9 = scalar_lea.sflag [#allocation3], 1
    %10 = vsyncpa %s9, 0
    loop: start=0, step=1, limit=4
    $region2: #{tpu_custom_call.1} parent=1 // loop_pre_header
      _
    $region3: #{tpu_custom_call.1} parent=1 // loop_header
      %s12 = sphi 0, %s16
      %p13 = scmp.ge.s32.totalorder %s12, 4
      %s22 = sphi 0, %s24
      %s25 = sphi 0, %s22
      %s26 = sphi 0, %s25
      %s42 = sphi 0, %s26
      %s48 = sphi 0, %s50
      %s51 = sphi 0, %s48
      %s52 = sphi 0, %s51
      %s68 = sphi 0, %s52
      %s74 = sphi 0, %s76
      %s77 = sphi 0, %s74
      %s78 = sphi 0, %s77
      %s94 = sphi 0, %s78
      %s100 = sphi 0, %s102
      %s103 = sphi 0, %s100
      %s104 = sphi 0, %s103
      %s120 = sphi 0, %s104
    $region4: #{tpu_custom_call.1} parent=1 // loop_header_branch
      %15 = sbr.rel (%p13) target = $region8
    $region5: #{tpu_custom_call.1} parent=1 // loop_body
      %s17 = ssub.s32 %s12, 1
      %s18 = ssub.s32 %s12, 2
      %s19 = sadd.s32 %s12, 1
      %s20 = ssub.s32 %s12, %s19
      %p21 = scmp.eq.s32.totalorder %s20, 0
      %s23 = sadd.s32 %s22, 1
      %s24 = scalar_select %p21, %s22, %s23
      %p27 = pneg %p21
      %p28 = scmp.eq.s32.totalorder %s12, 1
      %p29 = por %p27, %p28
      %p30 = scmp.ne.s32.totalorder %s22, %s25
      %p31 = scmp.eq.s32.totalorder %s12, 0
      %p32 = por %p30, %p31
      %p33 = scmp.ne.s32.totalorder %s22, %s25
      %p34 = scmp.eq.s32.totalorder %s17, 1
      %p35 = por %p33, %p34
      %p36 = scmp.ne.s32.totalorder %s25, %s26
      %p37 = scmp.eq.s32.totalorder %s17, 0
      %p38 = por %p36, %p37
      %p39 = scmp.ne.s32.totalorder %s25, %s26
      %p40 = scmp.eq.s32.totalorder %s18, 1
      %p41 = por %p39, %p40
      %p43 = scmp.ne.s32.totalorder %s26, %s42
      %p44 = scmp.eq.s32.totalorder %s18, 0
      %p45 = por %p43, %p44
      %s46 = ssub.s32 %s12, %s19
      %p47 = scmp.eq.s32.totalorder %s46, 0
      %s49 = sadd.s32 %s48, 1
      %s50 = scalar_select %p47, %s48, %s49
      %p53 = pneg %p47
      %p54 = scmp.eq.s32.totalorder %s12, 1
      %p55 = por %p53, %p54
      %p56 = scmp.ne.s32.totalorder %s48, %s51
      %p57 = scmp.eq.s32.totalorder %s12, 0
      %p58 = por %p56, %p57
      %p59 = scmp.ne.s32.totalorder %s48, %s51
      %p60 = scmp.eq.s32.totalorder %s17, 1
      %p61 = por %p59, %p60
      %p62 = scmp.ne.s32.totalorder %s51, %s52
      %p63 = scmp.eq.s32.totalorder %s17, 0
      %p64 = por %p62, %p63
      %p65 = scmp.ne.s32.totalorder %s51, %s52
      %p66 = scmp.eq.s32.totalorder %s18, 1
      %p67 = por %p65, %p66
      %p69 = scmp.ne.s32.totalorder %s52, %s68
      %p70 = scmp.eq.s32.totalorder %s18, 0
      %p71 = por %p69, %p70
      %s72 = ssub.s32 %s12, %s19
      %p73 = scmp.eq.s32.totalorder %s72, 0
      %s75 = sadd.s32 %s74, 1
      %s76 = scalar_select %p73, %s74, %s75
      %p79 = pneg %p73
      %p80 = scmp.eq.s32.totalorder %s12, 1
      %p81 = por %p79, %p80
      %p82 = scmp.ne.s32.totalorder %s74, %s77
      %p83 = scmp.eq.s32.totalorder %s12, 0
      %p84 = por %p82, %p83
      %p85 = scmp.ne.s32.totalorder %s74, %s77
      %p86 = scmp.eq.s32.totalorder %s17, 1
      %p87 = por %p85, %p86
      %p88 = scmp.ne.s32.totalorder %s77, %s78
      %p89 = scmp.eq.s32.totalorder %s17, 0
      %p90 = por %p88, %p89
      %p91 = scmp.ne.s32.totalorder %s77, %s78
      %p92 = scmp.eq.s32.totalorder %s18, 1
      %p93 = por %p91, %p92
      %p95 = scmp.ne.s32.totalorder %s78, %s94
      %p96 = scmp.eq.s32.totalorder %s18, 0
      %p97 = por %p95, %p96
      %s98 = ssub.s32 %s12, %s19
      %p99 = scmp.eq.s32.totalorder %s98, 0
      %s101 = sadd.s32 %s100, 1
      %s102 = scalar_select %p99, %s100, %s101
      %p105 = pneg %p99
      %p106 = scmp.eq.s32.totalorder %s12, 1
      %p107 = por %p105, %p106
      %p108 = scmp.ne.s32.totalorder %s100, %s103
      %p109 = scmp.eq.s32.totalorder %s12, 0
      %p110 = por %p108, %p109
      %p111 = scmp.ne.s32.totalorder %s100, %s103
      %p112 = scmp.eq.s32.totalorder %s17, 1
      %p113 = por %p111, %p112
      %p114 = scmp.ne.s32.totalorder %s103, %s104
      %p115 = scmp.eq.s32.totalorder %s17, 0
      %p116 = por %p114, %p115
      %p117 = scmp.ne.s32.totalorder %s103, %s104
      %p118 = scmp.eq.s32.totalorder %s18, 1
      %p119 = por %p117, %p118
      %p121 = scmp.ne.s32.totalorder %s104, %s120
      %p122 = scmp.eq.s32.totalorder %s18, 0
      %p123 = por %p121, %p122
      %p124 = scmp.le.s32.totalorder 1, %s12
      %p125 = scmp.lt.s32.totalorder %s12, 3
      %p126 = pnand %p124, %p125
      %p127 = pneg %p126
      // Predicated region
      $region9: #{tpu_custom_call.1} parent=5 // pred_check
        _
      $region10: #{tpu_custom_call.1} parent=5 // pred_check_branch
        %129 = sbr.rel (%p126) target = $region12
      $region11: #{tpu_custom_call.1} parent=5 // pred_region
        %s130 = ssub.s32 %s12, 1
      $region12: #{tpu_custom_call.1} parent=5 // pred_fallthru
        _
      %p131 = scmp.lt.s32.totalorder %s12, 2
      // Predicated region
      $region13: #{tpu_custom_call.1} parent=5 // pred_check
        %p132 = pneg %p131
      $region14: #{tpu_custom_call.1} parent=5 // pred_check_branch
        %134 = sbr.rel (%p132) target = $region16
      $region15: #{tpu_custom_call.1} parent=5 // pred_region
        // Predicated region
        $region17: #{tpu_custom_call.1} parent=15 // pred_check
          %p135 = pneg %p32
        $region18: #{tpu_custom_call.1} parent=15 // pred_check_branch
          %137 = sbr.rel (%p135) target = $region20
        $region19: #{tpu_custom_call.1} parent=15 // pred_region
          %s138 = smul.u32 2, %s12
          %p139 = scmp.lt.s32.totalorder %s138, 3
          %s140 = scalar_select %p139, %s138, 3
          %s141 = smul.addr %s140, 2
          %s142 = smul.addr %s141, 8
          %s143 = scalar_lea.vmem %s0, %s142
          %s144 = smul.u32 2, %s12
        $region20: #{tpu_custom_call.1} parent=15 // pred_fallthru
          _
        // Predicated region
        $region21: #{tpu_custom_call.1} parent=15 // pred_check
          %p145 = pneg %p58
        $region22: #{tpu_custom_call.1} parent=15 // pred_check_branch
          %147 = sbr.rel (%p145) target = $region24
        $region23: #{tpu_custom_call.1} parent=15 // pred_region
          %s148 = smul.u32 2, %s12
          %p149 = scmp.lt.s32.totalorder %s148, 3
          %s150 = scalar_select %p149, %s148, 3
          %s151 = smul.addr %s150, 2
          %s152 = smul.addr %s151, 8
          %s153 = scalar_lea.vmem %s1, %s152
          %s154 = smul.u32 2, %s12
        $region24: #{tpu_custom_call.1} parent=15 // pred_fallthru
          _
        // Predicated region
        $region25: #{tpu_custom_call.1} parent=15 // pred_check
          %p155 = pneg %p84
        $region26: #{tpu_custom_call.1} parent=15 // pred_check_branch
          %157 = sbr.rel (%p155) target = $region28
        $region27: #{tpu_custom_call.1} parent=15 // pred_region
          %s158 = smul.u32 2, %s12
          %p159 = scmp.lt.s32.totalorder %s158, 3
          %s160 = scalar_select %p159, %s158, 3
          %s161 = smul.addr %s160, 8
          %s162 = scalar_lea.vmem %s2, %s161
          %s163 = smul.u32 2, %s12
        $region28: #{tpu_custom_call.1} parent=15 // pred_fallthru
          _
      $region16: #{tpu_custom_call.1} parent=5 // pred_fallthru
        _
      %p164 = scmp.le.s32.totalorder 1, %s12
      %p165 = scmp.lt.s32.totalorder %s12, 3
      %p166 = pnand %p164, %p165
      %p167 = pneg %p166
      // Predicated region
      $region29: #{tpu_custom_call.1} parent=5 // pred_check
        _
      $region30: #{tpu_custom_call.1} parent=5 // pred_check_branch
        %169 = sbr.rel (%p166) target = $region32
      $region31: #{tpu_custom_call.1} parent=5 // pred_region
        %s170 = ssub.s32 %s12, 1
        %s171 = smul.u32 2, %s17
        %p172 = scmp.lt.s32.totalorder %s171, 3
        %s173 = scalar_select %p172, %s171, 3
        %s174 = smul.addr %s173, 2
        %s175 = smul.addr %s174, 8
        %s176 = scalar_lea.vmem %s0, %s175
        %p177 = pneg %p38
        %p178 = pneg %p35
        %s179 = smul.u32 2, %s17
        %p180 = scmp.lt.s32.totalorder %s179, 3
        %s181 = scalar_select %p180, %s179, 3
        %s182 = smul.addr %s181, 2
        %s183 = smul.addr %s182, 8
        %s184 = scalar_lea.vmem %s1, %s183
        %p185 = pneg %p64
        %p186 = pneg %p61
        %s187 = smul.u32 2, %s17
        %p188 = scmp.lt.s32.totalorder %s187, 3
        %s189 = scalar_select %p188, %s187, 3
        %s190 = smul.addr %s189, 8
        %s191 = scalar_lea.vmem %s2, %s190
        %p192 = pneg %p90
        %p193 = pneg %p87
        %p194 = pneg %p116
        %p195 = pneg %p113
        %s196 = sand.u32 %s103, 1
        %s197 = scalar_lea.sflag [#allocation3], %s196
        %s198 = sand.u32 %s103, 1
        %s199 = smul.addr %s198, 32
        %s200 = scalar_lea.vmem [#allocation2], %s199
        %s201 = smul.u32 2, %s17
        %p202 = scmp.lt.s32.totalorder %s201, 3
        %s203 = scalar_select %p202, %s201, 3
        %s204 = smul.addr %s203, 2
        %s205 = smul.addr %s204, 8
        %s206 = scalar_lea.vmem %s0, %s205
        %s207 = smul.u32 2, %s17
        %s208 = smul.u32 2, %s17
        %p209 = scmp.lt.s32.totalorder %s208, 3
        %s210 = scalar_select %p209, %s208, 3
        %s211 = smul.addr %s210, 2
        %s212 = smul.addr %s211, 8
        %s213 = scalar_lea.vmem %s1, %s212
        %s214 = smul.u32 2, %s17
        %s215 = smul.u32 2, %s17
        %p216 = scmp.lt.s32.totalorder %s215, 3
        %s217 = scalar_select %p216, %s215, 3
        %s218 = smul.addr %s217, 8
        %s219 = scalar_lea.vmem %s2, %s218
        %s220 = smul.u32 2, %s17
        %s221 = smul.u32 2, %s17
        %v222 = vld [vmem:[%s206] sm:$0xff]
        %v223 = vld [vmem:[%s206 + $0x8] sm:$0xff]
        %v224 = vld [vmem:[%s206 + $0x10] sm:$0xff]
        %v225 = vld [vmem:[%s206 + $0x18] sm:$0xff]
        %vm226 = vcmask 64512
        %v227 = vsel %vm226, %v222, -inf
        %228 = vmax.xlane.f32.xlu0 %v227
        %v229 = vpop.xlane.xlu0 %228
        %v230 = vsel %vm226, %v223, -inf
        %231 = vmax.xlane.f32.xlu0 %v230
        %v232 = vpop.xlane.xlu0 %231
        %v233 = vsel %vm226, %v224, -inf
        %234 = vmax.xlane.f32.xlu0 %v233
        %v235 = vpop.xlane.xlu0 %234
        %v236 = vsel %vm226, %v225, -inf
        %237 = vmax.xlane.f32.xlu0 %v236
        %v238 = vpop.xlane.xlu0 %237
        %v239 = vsub.f32 %v222, %v229
        %v240 = vsub.f32 %v223, %v232
        %v241 = vsub.f32 %v224, %v235
        %v242 = vsub.f32 %v225, %v238
        %v243 = vmul.f32 %v239, 1.442695
        %v244 = vpow.pop %v243
        %v245 = vmul.f32 %v240, 1.442695
        %v246 = vpow.pop %v245
        %v247 = vmul.f32 %v241, 1.442695
        %v248 = vpow.pop %v247
        %v249 = vmul.f32 %v242, 1.442695
        %v250 = vpow.pop %v249
        %v251 = vsel %vm226, %v244, 0.0
        %252 = vadd.xlane.f32.xlu0 %v251
        %v253 = vpop.xlane.xlu0 %252
        %v254 = vsel %vm226, %v246, 0.0
        %255 = vadd.xlane.f32.xlu0 %v254
        %v256 = vpop.xlane.xlu0 %255
        %v257 = vsel %vm226, %v248, 0.0
        %258 = vadd.xlane.f32.xlu0 %v257
        %v259 = vpop.xlane.xlu0 %258
        %v260 = vsel %vm226, %v250, 0.0
        %261 = vadd.xlane.f32.xlu0 %v260
        %v262 = vpop.xlane.xlu0 %261
        %v263 = vrcp.pop %v253
        %v264 = vmul.f32 %v244, %v263
        %v265 = vrcp.pop %v256
        %v266 = vmul.f32 %v246, %v265
        %v267 = vrcp.pop %v259
        %v268 = vmul.f32 %v248, %v267
        %v269 = vrcp.pop %v262
        %v270 = vmul.f32 %v250, %v269
        %v271 = vmul.f32 %v264, 2.0
        %v272 = vmul.f32 %v266, 2.0
        %v273 = vmul.f32 %v268, 2.0
        %v274 = vmul.f32 %v270, 2.0
        %v275 = vld [vmem:[%s219] sm:$0xff]
        %v276 = vld [vmem:[%s219 + $0x8] sm:$0xff]
        %v277 = vcvt.f32.s32.to.zero.pseudo %v275
        %v278 = vcvt.f32.s32.to.zero.pseudo %v276
        %v279 = vld [vmem:[%s213] sm:$0xff]
        %v280 = vld [vmem:[%s213 + $0x8] sm:$0xff]
        %v281 = vld [vmem:[%s213 + $0x10] sm:$0xff]
        %v282 = vld [vmem:[%s213 + $0x18] sm:$0xff]
        %284 = vset.pattern.permute.xlu0 0
        %285 = vperm.xlu0 %284, %v279
        %v286 = vpop.permute.xlu0 %285
        %289 = vset.pattern.permute.xlu0 0
        %290 = vperm.xlu0 %289, %v280
        %v291 = vpop.permute.xlu0 %290
        %294 = vset.pattern.permute.xlu0 0
        %295 = vperm.xlu0 %294, %v281
        %v296 = vpop.permute.xlu0 %295
        %299 = vset.pattern.permute.xlu0 0
        %300 = vperm.xlu0 %299, %v282
        %v301 = vpop.permute.xlu0 %300
        %v303 = vlaneseq
        %v304 = vshrl.u32 %v303, 7
        %v305 = vsub.s32 0, %v304
        %v306 = vrot.slane %v275, %v305
        %v307 = vlaneseq
        %v308 = vshrl.u32 %v307, 7
        %v309 = vsub.s32 0, %v308
        %v310 = vrot.slane %v276, %v309
        %v311 = vsub.f32 %v286, %v306
        %v312 = vsub.f32 %v291, %v306
        %v313 = vsub.f32 %v296, %v310
        %v314 = vsub.f32 %v301, %v310
        %v315 = vand.u32 2147483647, %v311
        %v316 = vand.u32 2147483647, %v312
        %v317 = vand.u32 2147483647, %v313
        %v318 = vand.u32 2147483647, %v314
        %319 = vset.pattern.permute.xlu0 1
        %320 = vperm.xlu0 %319, %v279
        %v321 = vpop.permute.xlu0 %320
        %323 = vset.pattern.permute.xlu0 1
        %324 = vperm.xlu0 %323, %v280
        %v325 = vpop.permute.xlu0 %324
        %327 = vset.pattern.permute.xlu0 1
        %328 = vperm.xlu0 %327, %v281
        %v329 = vpop.permute.xlu0 %328
        %331 = vset.pattern.permute.xlu0 1
        %332 = vperm.xlu0 %331, %v282
        %v333 = vpop.permute.xlu0 %332
        %v335 = vlaneseq
        %v336 = vshrl.u32 %v335, 7
        %v337 = vsub.s32 1, %v336
        %v338 = vrot.slane %v275, %v337
        %v339 = vlaneseq
        %v340 = vshrl.u32 %v339, 7
        %v341 = vsub.s32 1, %v340
        %v342 = vrot.slane %v276, %v341
        %v343 = vsub.f32 %v321, %v338
        %v344 = vsub.f32 %v325, %v338
        %v345 = vsub.f32 %v329, %v342
        %v346 = vsub.f32 %v333, %v342
        %v347 = vand.u32 2147483647, %v343
        %v348 = vand.u32 2147483647, %v344
        %v349 = vand.u32 2147483647, %v345
        %v350 = vand.u32 2147483647, %v346
        %v351 = vadd.f32 %v315, %v347
        %v352 = vadd.f32 %v316, %v348
        %v353 = vadd.f32 %v317, %v349
        %v354 = vadd.f32 %v318, %v350
        %355 = vset.pattern.permute.xlu0 2
        %356 = vperm.xlu0 %355, %v279
        %v357 = vpop.permute.xlu0 %356
        %359 = vset.pattern.permute.xlu0 2
        %360 = vperm.xlu0 %359, %v280
        %v361 = vpop.permute.xlu0 %360
        %363 = vset.pattern.permute.xlu0 2
        %364 = vperm.xlu0 %363, %v281
        %v365 = vpop.permute.xlu0 %364
        %367 = vset.pattern.permute.xlu0 2
        %368 = vperm.xlu0 %367, %v282
        %v369 = vpop.permute.xlu0 %368
        %v371 = vlaneseq
        %v372 = vshrl.u32 %v371, 7
        %v373 = vsub.s32 2, %v372
        %v374 = vrot.slane %v275, %v373
        %v375 = vlaneseq
        %v376 = vshrl.u32 %v375, 7
        %v377 = vsub.s32 2, %v376
        %v378 = vrot.slane %v276, %v377
        %v379 = vsub.f32 %v357, %v374
        %v380 = vsub.f32 %v361, %v374
        %v381 = vsub.f32 %v365, %v378
        %v382 = vsub.f32 %v369, %v378
        %v383 = vand.u32 2147483647, %v379
        %v384 = vand.u32 2147483647, %v380
        %v385 = vand.u32 2147483647, %v381
        %v386 = vand.u32 2147483647, %v382
        %v387 = vadd.f32 %v351, %v383
        %v388 = vadd.f32 %v352, %v384
        %v389 = vadd.f32 %v353, %v385
        %v390 = vadd.f32 %v354, %v386
        %391 = vset.pattern.permute.xlu0 3
        %392 = vperm.xlu0 %391, %v279
        %v393 = vpop.permute.xlu0 %392
        %395 = vset.pattern.permute.xlu0 3
        %396 = vperm.xlu0 %395, %v280
        %v397 = vpop.permute.xlu0 %396
        %399 = vset.pattern.permute.xlu0 3
        %400 = vperm.xlu0 %399, %v281
        %v401 = vpop.permute.xlu0 %400
        %403 = vset.pattern.permute.xlu0 3
        %404 = vperm.xlu0 %403, %v282
        %v405 = vpop.permute.xlu0 %404
        %v407 = vlaneseq
        %v408 = vshrl.u32 %v407, 7
        %v409 = vsub.s32 3, %v408
        %v410 = vrot.slane %v275, %v409
        %v411 = vlaneseq
        %v412 = vshrl.u32 %v411, 7
        %v413 = vsub.s32 3, %v412
        %v414 = vrot.slane %v276, %v413
        %v415 = vsub.f32 %v393, %v410
        %v416 = vsub.f32 %v397, %v410
        %v417 = vsub.f32 %v401, %v414
        %v418 = vsub.f32 %v405, %v414
        %v419 = vand.u32 2147483647, %v415
        %v420 = vand.u32 2147483647, %v416
        %v421 = vand.u32 2147483647, %v417
        %v422 = vand.u32 2147483647, %v418
        %v423 = vadd.f32 %v387, %v419
        %v424 = vadd.f32 %v388, %v420
        %v425 = vadd.f32 %v389, %v421
        %v426 = vadd.f32 %v390, %v422
        %v427 = vmul.f32 %v423, 5.0
        %v428 = vmul.f32 %v424, 5.0
        %v429 = vmul.f32 %v425, 5.0
        %v430 = vmul.f32 %v426, 5.0
        %vm431 = vcmp.eq.f32.partialorder %v275, 0.0
        %vm432 = vcmp.eq.f32.partialorder %v276, 0.0
        %v433 = vsub.f32 0.0, %v271
        %v434 = vsub.f32 0.0, %v272
        %v435 = vsub.f32 0.0, %v273
        %v436 = vsub.f32 0.0, %v274
        %v437 = vsel %vm431, 1, 0
        %v438 = vsel %vm432, 1, 0
        %v439 = vlaneseq
        %v440 = vshrl.u32 %v439, 7
        %v441 = vsub.s32 4, %v440
        %v442 = vrot.slane %v437, %v441
        %v443 = vlaneseq
        %v444 = vshrl.u32 %v443, 7
        %v445 = vsub.s32 4, %v444
        %v446 = vrot.slane %v438, %v445
        %vm447 = vcmp.eq.s32.totalorder %v442, 1
        %vm448 = vcmp.eq.s32.totalorder %v446, 1
        %450 = vset.pattern.permute.xlu0 0
        %451 = vperm.xlu0 %450, %v433
        %v452 = vpop.permute.xlu0 %451
        %455 = vset.pattern.permute.xlu0 0
        %456 = vperm.xlu0 %455, %v434
        %v457 = vpop.permute.xlu0 %456
        %460 = vset.pattern.permute.xlu0 0
        %461 = vperm.xlu0 %460, %v435
        %v462 = vpop.permute.xlu0 %461
        %465 = vset.pattern.permute.xlu0 0
        %466 = vperm.xlu0 %465, %v436
        %v467 = vpop.permute.xlu0 %466
        %v469 = vsel %vm447, %v452, 0.0
        %v470 = vsel %vm447, %v457, 0.0
        %v471 = vsel %vm448, %v462, 0.0
        %v472 = vsel %vm448, %v467, 0.0
        %vm473 = vcmp.eq.f32.partialorder %v275, 1.0
        %vm474 = vcmp.eq.f32.partialorder %v276, 1.0
        %v475 = vsel %vm473, 1, 0
        %v476 = vsel %vm474, 1, 0
        %v477 = vlaneseq
        %v478 = vshrl.u32 %v477, 7
        %v479 = vsub.s32 4, %v478
        %v480 = vrot.slane %v475, %v479
        %v481 = vlaneseq
        %v482 = vshrl.u32 %v481, 7
        %v483 = vsub.s32 4, %v482
        %v484 = vrot.slane %v476, %v483
        %vm485 = vcmp.eq.s32.totalorder %v480, 1
        %vm486 = vcmp.eq.s32.totalorder %v484, 1
        %487 = vset.pattern.permute.xlu0 1
        %488 = vperm.xlu0 %487, %v433
        %v489 = vpop.permute.xlu0 %488
        %491 = vset.pattern.permute.xlu0 1
        %492 = vperm.xlu0 %491, %v434
        %v493 = vpop.permute.xlu0 %492
        %495 = vset.pattern.permute.xlu0 1
        %496 = vperm.xlu0 %495, %v435
        %v497 = vpop.permute.xlu0 %496
        %499 = vset.pattern.permute.xlu0 1
        %500 = vperm.xlu0 %499, %v436
        %v501 = vpop.permute.xlu0 %500
        %v503 = vsel %vm485, %v489, %v469
        %v504 = vsel %vm485, %v493, %v470
        %v505 = vsel %vm486, %v497, %v471
        %v506 = vsel %vm486, %v501, %v472
        %vm507 = vcmp.eq.f32.partialorder %v275, 2.0
        %vm508 = vcmp.eq.f32.partialorder %v276, 2.0
        %v509 = vsel %vm507, 1, 0
        %v510 = vsel %vm508, 1, 0
        %v511 = vlaneseq
        %v512 = vshrl.u32 %v511, 7
        %v513 = vsub.s32 4, %v512
        %v514 = vrot.slane %v509, %v513
        %v515 = vlaneseq
        %v516 = vshrl.u32 %v515, 7
        %v517 = vsub.s32 4, %v516
        %v518 = vrot.slane %v510, %v517
        %vm519 = vcmp.eq.s32.totalorder %v514, 1
        %vm520 = vcmp.eq.s32.totalorder %v518, 1
        %521 = vset.pattern.permute.xlu0 2
        %522 = vperm.xlu0 %521, %v433
        %v523 = vpop.permute.xlu0 %522
        %525 = vset.pattern.permute.xlu0 2
        %526 = vperm.xlu0 %525, %v434
        %v527 = vpop.permute.xlu0 %526
        %529 = vset.pattern.permute.xlu0 2
        %530 = vperm.xlu0 %529, %v435
        %v531 = vpop.permute.xlu0 %530
        %533 = vset.pattern.permute.xlu0 2
        %534 = vperm.xlu0 %533, %v436
        %v535 = vpop.permute.xlu0 %534
        %v537 = vsel %vm519, %v523, %v503
        %v538 = vsel %vm519, %v527, %v504
        %v539 = vsel %vm520, %v531, %v505
        %v540 = vsel %vm520, %v535, %v506
        %vm541 = vcmp.eq.f32.partialorder %v275, 3.0
        %vm542 = vcmp.eq.f32.partialorder %v276, 3.0
        %v543 = vsel %vm541, 1, 0
        %v544 = vsel %vm542, 1, 0
        %v545 = vlaneseq
        %v546 = vshrl.u32 %v545, 7
        %v547 = vsub.s32 4, %v546
        %v548 = vrot.slane %v543, %v547
        %v549 = vlaneseq
        %v550 = vshrl.u32 %v549, 7
        %v551 = vsub.s32 4, %v550
        %v552 = vrot.slane %v544, %v551
        %vm553 = vcmp.eq.s32.totalorder %v548, 1
        %vm554 = vcmp.eq.s32.totalorder %v552, 1
        %555 = vset.pattern.permute.xlu0 3
        %556 = vperm.xlu0 %555, %v433
        %v557 = vpop.permute.xlu0 %556
        %559 = vset.pattern.permute.xlu0 3
        %560 = vperm.xlu0 %559, %v434
        %v561 = vpop.permute.xlu0 %560
        %563 = vset.pattern.permute.xlu0 3
        %564 = vperm.xlu0 %563, %v435
        %v565 = vpop.permute.xlu0 %564
        %567 = vset.pattern.permute.xlu0 3
        %568 = vperm.xlu0 %567, %v436
        %v569 = vpop.permute.xlu0 %568
        %v571 = vsel %vm553, %v557, %v537
        %v572 = vsel %vm553, %v561, %v538
        %v573 = vsel %vm554, %v565, %v539
        %v574 = vsel %vm554, %v569, %v540
        %vm575 = vcmp.eq.f32.partialorder %v275, 4.0
        %vm576 = vcmp.eq.f32.partialorder %v276, 4.0
        %v577 = vsel %vm575, 1, 0
        %v578 = vsel %vm576, 1, 0
        %v579 = vlaneseq
        %v580 = vshrl.u32 %v579, 7
        %v581 = vsub.s32 4, %v580
        %v582 = vrot.slane %v577, %v581
        %v583 = vlaneseq
        %v584 = vshrl.u32 %v583, 7
        %v585 = vsub.s32 4, %v584
        %v586 = vrot.slane %v578, %v585
        %vm587 = vcmp.eq.s32.totalorder %v582, 1
        %vm588 = vcmp.eq.s32.totalorder %v586, 1
        %589 = vset.pattern.permute.xlu0 4
        %590 = vperm.xlu0 %589, %v433
        %v591 = vpop.permute.xlu0 %590
        %593 = vset.pattern.permute.xlu0 4
        %594 = vperm.xlu0 %593, %v434
        %v595 = vpop.permute.xlu0 %594
        %597 = vset.pattern.permute.xlu0 4
        %598 = vperm.xlu0 %597, %v435
        %v599 = vpop.permute.xlu0 %598
        %601 = vset.pattern.permute.xlu0 4
        %602 = vperm.xlu0 %601, %v436
        %v603 = vpop.permute.xlu0 %602
        %v605 = vsel %vm587, %v591, %v571
        %v606 = vsel %vm587, %v595, %v572
        %v607 = vsel %vm588, %v599, %v573
        %v608 = vsel %vm588, %v603, %v574
        %vm609 = vcmp.eq.f32.partialorder %v275, 5.0
        %vm610 = vcmp.eq.f32.partialorder %v276, 5.0
        %v611 = vsel %vm609, 1, 0
        %v612 = vsel %vm610, 1, 0
        %v613 = vlaneseq
        %v614 = vshrl.u32 %v613, 7
        %v615 = vsub.s32 4, %v614
        %v616 = vrot.slane %v611, %v615
        %v617 = vlaneseq
        %v618 = vshrl.u32 %v617, 7
        %v619 = vsub.s32 4, %v618
        %v620 = vrot.slane %v612, %v619
        %vm621 = vcmp.eq.s32.totalorder %v616, 1
        %vm622 = vcmp.eq.s32.totalorder %v620, 1
        %623 = vset.pattern.permute.xlu0 5
        %624 = vperm.xlu0 %623, %v433
        %v625 = vpop.permute.xlu0 %624
        %627 = vset.pattern.permute.xlu0 5
        %628 = vperm.xlu0 %627, %v434
        %v629 = vpop.permute.xlu0 %628
        %631 = vset.pattern.permute.xlu0 5
        %632 = vperm.xlu0 %631, %v435
        %v633 = vpop.permute.xlu0 %632
        %635 = vset.pattern.permute.xlu0 5
        %636 = vperm.xlu0 %635, %v436
        %v637 = vpop.permute.xlu0 %636
        %v639 = vsel %vm621, %v625, %v605
        %v640 = vsel %vm621, %v629, %v606
        %v641 = vsel %vm622, %v633, %v607
        %v642 = vsel %vm622, %v637, %v608
        %vm643 = vcmp.eq.f32.partialorder %v275, 6.0
        %vm644 = vcmp.eq.f32.partialorder %v276, 6.0
        %v645 = vsel %vm643, 1, 0
        %v646 = vsel %vm644, 1, 0
        %v647 = vlaneseq
        %v648 = vshrl.u32 %v647, 7
        %v649 = vsub.s32 4, %v648
        %v650 = vrot.slane %v645, %v649
        %v651 = vlaneseq
        %v652 = vshrl.u32 %v651, 7
        %v653 = vsub.s32 4, %v652
        %v654 = vrot.slane %v646, %v653
        %vm655 = vcmp.eq.s32.totalorder %v650, 1
        %vm656 = vcmp.eq.s32.totalorder %v654, 1
        %657 = vset.pattern.permute.xlu0 6
        %658 = vperm.xlu0 %657, %v433
        %v659 = vpop.permute.xlu0 %658
        %661 = vset.pattern.permute.xlu0 6
        %662 = vperm.xlu0 %661, %v434
        %v663 = vpop.permute.xlu0 %662
        %665 = vset.pattern.permute.xlu0 6
        %666 = vperm.xlu0 %665, %v435
        %v667 = vpop.permute.xlu0 %666
        %669 = vset.pattern.permute.xlu0 6
        %670 = vperm.xlu0 %669, %v436
        %v671 = vpop.permute.xlu0 %670
        %v673 = vsel %vm655, %v659, %v639
        %v674 = vsel %vm655, %v663, %v640
        %v675 = vsel %vm656, %v667, %v641
        %v676 = vsel %vm656, %v671, %v642
        %vm677 = vcmp.eq.f32.partialorder %v275, 7.0
        %vm678 = vcmp.eq.f32.partialorder %v276, 7.0
        %v679 = vsel %vm677, 1, 0
        %v680 = vsel %vm678, 1, 0
        %v681 = vlaneseq
        %v682 = vshrl.u32 %v681, 7
        %v683 = vsub.s32 4, %v682
        %v684 = vrot.slane %v679, %v683
        %v685 = vlaneseq
        %v686 = vshrl.u32 %v685, 7
        %v687 = vsub.s32 4, %v686
        %v688 = vrot.slane %v680, %v687
        %vm689 = vcmp.eq.s32.totalorder %v684, 1
        %vm690 = vcmp.eq.s32.totalorder %v688, 1
        %691 = vset.pattern.permute.xlu0 7
        %692 = vperm.xlu0 %691, %v433
        %v693 = vpop.permute.xlu0 %692
        %695 = vset.pattern.permute.xlu0 7
        %696 = vperm.xlu0 %695, %v434
        %v697 = vpop.permute.xlu0 %696
        %699 = vset.pattern.permute.xlu0 7
        %700 = vperm.xlu0 %699, %v435
        %v701 = vpop.permute.xlu0 %700
        %703 = vset.pattern.permute.xlu0 7
        %704 = vperm.xlu0 %703, %v436
        %v705 = vpop.permute.xlu0 %704
        %v707 = vsel %vm689, %v693, %v673
        %v708 = vsel %vm689, %v697, %v674
        %v709 = vsel %vm690, %v701, %v675
        %v710 = vsel %vm690, %v705, %v676
        %v711 = vadd.f32 %v427, %v707
        %v712 = vadd.f32 %v428, %v708
        %v713 = vadd.f32 %v429, %v709
        %v714 = vadd.f32 %v430, %v710
        %v715 = vmul.f32 %v279, 0.5
        %v716 = vmul.f32 %v280, 0.5
        %v717 = vmul.f32 %v281, 0.5
        %v718 = vmul.f32 %v282, 0.5
        %723 = vrot.lane.b32.xlu0 %v715, 126
        %v724 = vpop.permute.xlu0 %723
        %725 = vrot.lane.b32.xlu0 %v716, 126
        %v726 = vpop.permute.xlu0 %725
        %727 = vrot.lane.b32.xlu0 %v717, 126
        %v728 = vpop.permute.xlu0 %727
        %729 = vrot.lane.b32.xlu0 %v718, 126
        %v730 = vpop.permute.xlu0 %729
        %v735 = vsub.f32 %v279, %v724
        %v736 = vsub.f32 %v280, %v726
        %v737 = vsub.f32 %v281, %v728
        %v738 = vsub.f32 %v282, %v730
        %v739 = vadd.f32 %v279, %v724
        %v740 = vadd.f32 %v280, %v726
        %v741 = vadd.f32 %v281, %v728
        %v742 = vadd.f32 %v282, %v730
        %v743 = vmul.f32 %v275, 0.5
        %v744 = vmul.f32 %v276, 0.5
        %v747 = vrot.slane %v743, 2
        %v748 = vrot.slane %v744, 2
        %v751 = vsub.f32 %v275, %v747
        %v752 = vsub.f32 %v276, %v748
        %v753 = vadd.f32 %v275, %v747
        %v754 = vadd.f32 %v276, %v748
        %v755 = vsub.f32 %v739, %v735
        %v756 = vsub.f32 %v740, %v736
        %v757 = vsub.f32 %v741, %v737
        %v758 = vsub.f32 %v742, %v738
        %763 = vrot.lane.b32.xlu0 %v755, 127
        %v764 = vpop.permute.xlu0 %763
        %765 = vrot.lane.b32.xlu0 %v756, 127
        %v766 = vpop.permute.xlu0 %765
        %767 = vrot.lane.b32.xlu0 %v757, 127
        %v768 = vpop.permute.xlu0 %767
        %769 = vrot.lane.b32.xlu0 %v758, 127
        %v770 = vpop.permute.xlu0 %769
        %v775 = vmul.f32 %v755, %v764
        %v776 = vmul.f32 %v756, %v766
        %v777 = vmul.f32 %v757, %v768
        %v778 = vmul.f32 %v758, %v770
        %v779 = vsub.f32 %v753, %v751
        %v780 = vsub.f32 %v754, %v752
        %v783 = vrot.slane %v779, 1
        %v784 = vrot.slane %v780, 1
        %v787 = vmul.f32 %v779, %v783
        %v788 = vmul.f32 %v780, %v784
        %790 = vset.pattern.permute.xlu0 0
        %791 = vperm.xlu0 %790, %v739
        %v792 = vpop.permute.xlu0 %791
        %795 = vset.pattern.permute.xlu0 0
        %796 = vperm.xlu0 %795, %v740
        %v797 = vpop.permute.xlu0 %796
        %800 = vset.pattern.permute.xlu0 0
        %801 = vperm.xlu0 %800, %v741
        %v802 = vpop.permute.xlu0 %801
        %805 = vset.pattern.permute.xlu0 0
        %806 = vperm.xlu0 %805, %v742
        %v807 = vpop.permute.xlu0 %806
        %v809 = vlaneseq
        %v810 = vshrl.u32 %v809, 7
        %v811 = vsub.s32 0, %v810
        %v812 = vrot.slane %v753, %v811
        %v813 = vlaneseq
        %v814 = vshrl.u32 %v813, 7
        %v815 = vsub.s32 0, %v814
        %v816 = vrot.slane %v754, %v815
        %v817 = vmin.f32 %v792, %v812
        %v818 = vmin.f32 %v797, %v812
        %v819 = vmin.f32 %v802, %v816
        %v820 = vmin.f32 %v807, %v816
        %822 = vset.pattern.permute.xlu0 0
        %823 = vperm.xlu0 %822, %v735
        %v824 = vpop.permute.xlu0 %823
        %827 = vset.pattern.permute.xlu0 0
        %828 = vperm.xlu0 %827, %v736
        %v829 = vpop.permute.xlu0 %828
        %832 = vset.pattern.permute.xlu0 0
        %833 = vperm.xlu0 %832, %v737
        %v834 = vpop.permute.xlu0 %833
        %837 = vset.pattern.permute.xlu0 0
        %838 = vperm.xlu0 %837, %v738
        %v839 = vpop.permute.xlu0 %838
        %v841 = vlaneseq
        %v842 = vshrl.u32 %v841, 7
        %v843 = vsub.s32 0, %v842
        %v844 = vrot.slane %v751, %v843
        %v845 = vlaneseq
        %v846 = vshrl.u32 %v845, 7
        %v847 = vsub.s32 0, %v846
        %v848 = vrot.slane %v752, %v847
        %v849 = vmax.f32 %v824, %v844
        %v850 = vmax.f32 %v829, %v844
        %v851 = vmax.f32 %v834, %v848
        %v852 = vmax.f32 %v839, %v848
        %v853 = vsub.f32 %v817, %v849
        %v854 = vsub.f32 %v818, %v850
        %v855 = vsub.f32 %v819, %v851
        %v856 = vsub.f32 %v820, %v852
        %v857 = vmax.f32 %v853, 0.0
        %v858 = vmax.f32 %v854, 0.0
        %v859 = vmax.f32 %v855, 0.0
        %v860 = vmax.f32 %v856, 0.0
        %861 = vset.pattern.permute.xlu0 1
        %862 = vperm.xlu0 %861, %v739
        %v863 = vpop.permute.xlu0 %862
        %865 = vset.pattern.permute.xlu0 1
        %866 = vperm.xlu0 %865, %v740
        %v867 = vpop.permute.xlu0 %866
        %869 = vset.pattern.permute.xlu0 1
        %870 = vperm.xlu0 %869, %v741
        %v871 = vpop.permute.xlu0 %870
        %873 = vset.pattern.permute.xlu0 1
        %874 = vperm.xlu0 %873, %v742
        %v875 = vpop.permute.xlu0 %874
        %v877 = vlaneseq
        %v878 = vshrl.u32 %v877, 7
        %v879 = vsub.s32 1, %v878
        %v880 = vrot.slane %v753, %v879
        %v881 = vlaneseq
        %v882 = vshrl.u32 %v881, 7
        %v883 = vsub.s32 1, %v882
        %v884 = vrot.slane %v754, %v883
        %v885 = vmin.f32 %v863, %v880
        %v886 = vmin.f32 %v867, %v880
        %v887 = vmin.f32 %v871, %v884
        %v888 = vmin.f32 %v875, %v884
        %889 = vset.pattern.permute.xlu0 1
        %890 = vperm.xlu0 %889, %v735
        %v891 = vpop.permute.xlu0 %890
        %893 = vset.pattern.permute.xlu0 1
        %894 = vperm.xlu0 %893, %v736
        %v895 = vpop.permute.xlu0 %894
        %897 = vset.pattern.permute.xlu0 1
        %898 = vperm.xlu0 %897, %v737
        %v899 = vpop.permute.xlu0 %898
        %901 = vset.pattern.permute.xlu0 1
        %902 = vperm.xlu0 %901, %v738
        %v903 = vpop.permute.xlu0 %902
        %v905 = vlaneseq
        %v906 = vshrl.u32 %v905, 7
        %v907 = vsub.s32 1, %v906
        %v908 = vrot.slane %v751, %v907
        %v909 = vlaneseq
        %v910 = vshrl.u32 %v909, 7
        %v911 = vsub.s32 1, %v910
        %v912 = vrot.slane %v752, %v911
        %v913 = vmax.f32 %v891, %v908
        %v914 = vmax.f32 %v895, %v908
        %v915 = vmax.f32 %v899, %v912
        %v916 = vmax.f32 %v903, %v912
        %v917 = vsub.f32 %v885, %v913
        %v918 = vsub.f32 %v886, %v914
        %v919 = vsub.f32 %v887, %v915
        %v920 = vsub.f32 %v888, %v916
        %v921 = vmax.f32 %v917, 0.0
        %v922 = vmax.f32 %v918, 0.0
        %v923 = vmax.f32 %v919, 0.0
        %v924 = vmax.f32 %v920, 0.0
        %v925 = vmul.f32 %v857, %v921
        %v926 = vmul.f32 %v858, %v922
        %v927 = vmul.f32 %v859, %v923
        %v928 = vmul.f32 %v860, %v924
        %930 = vset.pattern.permute.xlu0 0
        %931 = vperm.xlu0 %930, %v775
        %v932 = vpop.permute.xlu0 %931
        %935 = vset.pattern.permute.xlu0 0
        %936 = vperm.xlu0 %935, %v776
        %v937 = vpop.permute.xlu0 %936
        %940 = vset.pattern.permute.xlu0 0
        %941 = vperm.xlu0 %940, %v777
        %v942 = vpop.permute.xlu0 %941
        %945 = vset.pattern.permute.xlu0 0
        %946 = vperm.xlu0 %945, %v778
        %v947 = vpop.permute.xlu0 %946
        %v949 = vlaneseq
        %v950 = vshrl.u32 %v949, 7
        %v951 = vsub.s32 0, %v950
        %v952 = vrot.slane %v787, %v951
        %v953 = vlaneseq
        %v954 = vshrl.u32 %v953, 7
        %v955 = vsub.s32 0, %v954
        %v956 = vrot.slane %v788, %v955
        %v957 = vadd.f32 %v932, %v952
        %v958 = vadd.f32 %v937, %v952
        %v959 = vadd.f32 %v942, %v956
        %v960 = vadd.f32 %v947, %v956
        %v961 = vsub.f32 %v957, %v925
        %v962 = vsub.f32 %v958, %v926
        %v963 = vsub.f32 %v959, %v927
        %v964 = vsub.f32 %v960, %v928
        %v965 = vmax.f32 %v792, %v812
        %v966 = vmax.f32 %v797, %v812
        %v967 = vmax.f32 %v802, %v816
        %v968 = vmax.f32 %v807, %v816
        %v969 = vmin.f32 %v824, %v844
        %v970 = vmin.f32 %v829, %v844
        %v971 = vmin.f32 %v834, %v848
        %v972 = vmin.f32 %v839, %v848
        %v973 = vsub.f32 %v965, %v969
        %v974 = vsub.f32 %v966, %v970
        %v975 = vsub.f32 %v967, %v971
        %v976 = vsub.f32 %v968, %v972
        %v977 = vmax.f32 %v973, 0.0
        %v978 = vmax.f32 %v974, 0.0
        %v979 = vmax.f32 %v975, 0.0
        %v980 = vmax.f32 %v976, 0.0
        %v981 = vmax.f32 %v863, %v880
        %v982 = vmax.f32 %v867, %v880
        %v983 = vmax.f32 %v871, %v884
        %v984 = vmax.f32 %v875, %v884
        %v985 = vmin.f32 %v891, %v908
        %v986 = vmin.f32 %v895, %v908
        %v987 = vmin.f32 %v899, %v912
        %v988 = vmin.f32 %v903, %v912
        %v989 = vsub.f32 %v981, %v985
        %v990 = vsub.f32 %v982, %v986
        %v991 = vsub.f32 %v983, %v987
        %v992 = vsub.f32 %v984, %v988
        %v993 = vmax.f32 %v989, 0.0
        %v994 = vmax.f32 %v990, 0.0
        %v995 = vmax.f32 %v991, 0.0
        %v996 = vmax.f32 %v992, 0.0
        %v997 = vmul.f32 %v977, %v993
        %v998 = vmul.f32 %v978, %v994
        %v999 = vmul.f32 %v979, %v995
        %v1000 = vmul.f32 %v980, %v996
        %v1001 = vrcp.pop %v961
        %v1002 = vmul.f32 %v925, %v1001
        %v1003 = vrcp.pop %v962
        %v1004 = vmul.f32 %v926, %v1003
        %v1005 = vrcp.pop %v963
        %v1006 = vmul.f32 %v927, %v1005
        %v1007 = vrcp.pop %v964
        %v1008 = vmul.f32 %v928, %v1007
        %v1009 = vsub.f32 %v997, %v961
        %v1010 = vsub.f32 %v998, %v962
        %v1011 = vsub.f32 %v999, %v963
        %v1012 = vsub.f32 %v1000, %v964
        %v1013 = vrcp.pop %v997
        %v1014 = vmul.f32 %v1009, %v1013
        %v1015 = vrcp.pop %v998
        %v1016 = vmul.f32 %v1010, %v1015
        %v1017 = vrcp.pop %v999
        %v1018 = vmul.f32 %v1011, %v1017
        %v1019 = vrcp.pop %v1000
        %v1020 = vmul.f32 %v1012, %v1019
        %v1021 = vsub.f32 %v1002, %v1014
        %v1022 = vsub.f32 %v1004, %v1016
        %v1023 = vsub.f32 %v1006, %v1018
        %v1024 = vsub.f32 %v1008, %v1020
        %v1025 = vmul.f32 %v1021, 2.0
        %v1026 = vmul.f32 %v1022, 2.0
        %v1027 = vmul.f32 %v1023, 2.0
        %v1028 = vmul.f32 %v1024, 2.0
        %v1029 = vsub.f32 %v711, %v1025
        %v1030 = vsub.f32 %v712, %v1026
        %v1031 = vsub.f32 %v713, %v1027
        %v1032 = vsub.f32 %v714, %v1028
        %v1033 = vlaneseq
        %v1034 = vshrl.u32 %v1033, 7
        %v1035 = vadd.s32 %v1034, 8
        %vm1036 = vcmp.ge.s32.totalorder %v1034, 4
        %vm1037 = vcmp.ge.s32.totalorder %v1035, 4
        %v1038 = vsel %vm1036, 1, 0
        %v1039 = vsel %vm1037, 1, 0
        %vm1040 = vcmp.ge.s32.totalorder %v1034, 8
        %vm1041 = vcmp.ge.s32.totalorder %v1035, 8
        %v1042 = vsel %vm1040, 1, 0
        %v1043 = vsel %vm1041, 1, 0
        %v1044 = vadd.s32 %v1038, %v1042
        %v1045 = vadd.s32 %v1039, %v1043
        %vm1046 = vcmp.ge.s32.totalorder %v1034, 12
        %vm1047 = vcmp.ge.s32.totalorder %v1035, 12
        %v1048 = vsel %vm1046, 1, 0
        %v1049 = vsel %vm1047, 1, 0
        %v1050 = vadd.s32 %v1044, %v1048
        %v1051 = vadd.s32 %v1045, %v1049
        %v1052 = vlaneseq
        %v1053 = vshrl.u32 %v1052, 7
        %v1054 = vsub.s32 5, %v1053
        %v1055 = vrot.slane %v277, %v1054
        %v1056 = vlaneseq
        %v1057 = vshrl.u32 %v1056, 7
        %v1058 = vsub.s32 5, %v1057
        %v1059 = vrot.slane %v278, %v1058
        %vm1060 = vcmp.ne.s32.totalorder %v1050, %v1055
        %vm1061 = vcmp.ne.s32.totalorder %v1051, %v1055
        %vm1062 = vcmp.ne.s32.totalorder %v1050, %v1059
        %vm1063 = vcmp.ne.s32.totalorder %v1051, %v1059
        %v1064 = vsel %vm1060, 1e+08, %v1029
        %v1065 = vsel %vm1061, 1e+08, %v1030
        %v1066 = vsel %vm1062, 1e+08, %v1031
        %v1067 = vsel %vm1063, 1e+08, %v1032
        %1068 = vst [vmem:[%s200] sm:$0xff] %v1064
        %1069 = vst [vmem:[%s200 + $0x8] sm:$0xff] %v1065
        %1070 = vst [vmem:[%s200 + $0x10] sm:$0xff] %v1066
        %1071 = vst [vmem:[%s200 + $0x18] sm:$0xff] %v1067
        %s1072 = sand.u32 %s103, 1
        %s1073 = scalar_lea.sflag [#allocation3], %s1072
        %s1074 = sand.u32 %s103, 1
        %s1075 = smul.addr %s1074, 32
        %s1076 = scalar_lea.vmem [#allocation2], %s1075
        // Predicated region
        $region33: #{tpu_custom_call.1} parent=31 // pred_check
          %p1077 = pneg %p113
        $region34: #{tpu_custom_call.1} parent=31 // pred_check_branch
          %1079 = sbr.rel (%p1077) target = $region36
        $region35: #{tpu_custom_call.1} parent=31 // pred_region
          %s1080 = smul.u32 2, %s17
          %s1082 = ssub.s32 512, 512
          %1083 = vsyncadd %s1073, %s1082
          %s1084 = smul.addr %s1080, 2
          %s1085 = smul.addr %s1084, 128
          %s1086 = scalar_lea.hbm %s3, %s1085
          %s1087 = sshll.u32 %s1076, 4
          %s1088 = int_to_ptr.vmem [resolvable:$true] %s1087
          %1093 = dma.vmem_to_hbm [thread:$0]  %s1088, 512, %s1086, %s1073, 128, 128, 8
        $region36: #{tpu_custom_call.1} parent=31 // pred_fallthru
          _
      $region32: #{tpu_custom_call.1} parent=5 // pred_fallthru
        _
      %p1094 = scmp.le.s32.totalorder 2, %s12
      // Predicated region
      $region37: #{tpu_custom_call.1} parent=5 // pred_check
        %p1095 = pneg %p1094
      $region38: #{tpu_custom_call.1} parent=5 // pred_check_branch
        %1097 = sbr.rel (%p1095) target = $region40
      $region39: #{tpu_custom_call.1} parent=5 // pred_region
        %s1098 = ssub.s32 %s12, 2
        // Predicated region
        $region41: #{tpu_custom_call.1} parent=39 // pred_check
          %p1099 = pneg %p119
        $region42: #{tpu_custom_call.1} parent=39 // pred_check_branch
          %1101 = sbr.rel (%p1099) target = $region44
        $region43: #{tpu_custom_call.1} parent=39 // pred_region
          %s1102 = sand.u32 %s104, 1
          %s1103 = scalar_lea.sflag [#allocation3], %s1102
          %s1104 = sand.u32 %s104, 1
          %s1105 = smul.addr %s1104, 32
          %s1106 = scalar_lea.vmem [#allocation2], %s1105
          %1107 = dma.done %s1103, 512
        $region44: #{tpu_custom_call.1} parent=39 // pred_fallthru
          _
      $region40: #{tpu_custom_call.1} parent=5 // pred_fallthru
        _
    $region6: #{tpu_custom_call.1} parent=1 // loop_footer
      %s16 = sadd.s32 1, %s12
    $region7: #{tpu_custom_call.1} parent=1 // loop_footer_branch
      %11 = sbr.rel target = $region3
    $region8: #{tpu_custom_call.1} parent=1 // loop_exit
      _
    %1108 = vsyncpa [#allocation3], 1
    %s1109 = scalar_lea.sflag [#allocation3], 1
    %1110 = vsyncpa %s1109, 1

</llo_original>
